<compile_context>
chip_gen: v7x
topology: tpu7x:2x2x1
jax: 0.10.0
libtpu: 0.0.40
codegen_flags: <defaults>
</compile_context>

<pallas_src>
import jax
import jax.numpy as jnp
from jax.experimental import pallas as pl
from jax.experimental.pallas import tpu as pltpu


# ---------------------------------------------------------------------------
# Fused Pallas kernel: embedding output -> 4x SAGEConv(mean)+PReLU+BN -> mean
# ---------------------------------------------------------------------------
def gcn_fused_kernel(a_ref, h0_ref, *rest):
    """Fused 4-layer SAGE GCN + mean-nodes readout.

    a_ref:   (N, N)   bf16 row-normalized adjacency (resident in VMEM once)
    h0_ref:  (N, E)   f32 embedded node features
    rest:    4 layers x [w_cat (2*Din, Dh) bf16,   # vstack(fc_self, fc_neigh)
                         bias (1, Dh) f32,
                         bn_scale (1, Dh) f32,     # gamma / sqrt(var+eps)
                         alpha_scale (1, Dh) f32,  # prelu_alpha * bn_scale
                         bn_shift (1, Dh) f32],    # beta - mean * bn_scale
             then o_ref (1, 4*Dh) f32 output,
             then cat_ref (N, 2*max(E, Dh)) bf16 VMEM scratch.
    """
    *layer_refs, o_ref, cat_ref = rest

    a = a_ref[...]                                  # (N, N) bf16
    h = h0_ref[...].astype(jnp.bfloat16)            # (N, E) bf16

    for l in range(4):
        w_ref, b_ref, sc_ref, asc_ref, sh_ref = layer_refs[5 * l:5 * (l + 1)]
        din = h.shape[1]

        # mean-aggregate neighbors on the MXU: (N, N) @ (N, Din)
        h_neigh = jnp.dot(a, h, preferred_element_type=jnp.float32)

        # pack [h | A@h] into the VMEM scratch -> one merged K=2*Din matmul
        cat_ref[:, 0:din] = h
        cat_ref[:, din:2 * din] = h_neigh.astype(jnp.bfloat16)
        z = jnp.dot(cat_ref[:, 0:2 * din], w_ref[...],
                    preferred_element_type=jnp.float32) + b_ref[...]

        # PReLU + folded eval-mode BatchNorm1d (f32 epilogue)
        out = jnp.where(z > 0.0, sc_ref[...] * z, asc_ref[...] * z) + sh_ref[...]

        # mean-nodes readout for this layer -> lane-adjacent output block
        dh = out.shape[1]
        o_ref[:, l * dh:(l + 1) * dh] = jnp.mean(out, axis=0, keepdims=True)

        h = out.astype(jnp.bfloat16)                # input of next layer


# ---------------------------------------------------------------------------
# Wrapper (whole forward under a single jit)
# ---------------------------------------------------------------------------
_VMEM = pl.BlockSpec(memory_space=pltpu.MemorySpace.VMEM)


@jax.jit
def gcn_forward(A_bf16, in_feat, params):
    """Full GCN forward.  in_feat: (N,) int32 token ids in [0, 256]."""
    # Embedding lookup (gather stays in plain JAX / XLA).
    h0 = params["embedding"][in_feat]                          # (N, E) f32

    flat = []
    for name in ("gcn1", "gcn2", "gcn3", "gcn4"):
        p = params[name]
        flat += [p["w_cat"], p["bias"], p["bn_scale"],
                 p["alpha_scale"], p["bn_shift"]]

    N = A_bf16.shape[0]
    E = h0.shape[1]
    Dh = params["gcn1"]["w_cat"].shape[1]
    out_dim = 4 * Dh
    cat_dim = 2 * max(E, Dh)

    return pl.pallas_call(
        gcn_fused_kernel,
        out_shape=jax.ShapeDtypeStruct((1, out_dim), jnp.float32),
        in_specs=[_VMEM] * (2 + len(flat)),
        out_specs=_VMEM,
        scratch_shapes=[pltpu.VMEM((N, cat_dim), jnp.bfloat16)],
    )(A_bf16, h0, *flat)


# ---------------------------------------------------------------------------
# Deterministic parameter construction
# ---------------------------------------------------------------------------
def init_params(key, embedding_size, h_feats, eps=1e-5):
    keys = jax.random.split(key, 32)
    ki = iter(range(32))

    params = {
        "embedding": 0.1 * jax.random.normal(
            keys[next(ki)], (256 + 1, embedding_size), dtype=jnp.float32),
    }

    in_dims = [embedding_size, h_feats, h_feats, h_feats]
    for li, name in enumerate(("gcn1", "gcn2", "gcn3", "gcn4")):
        din = in_dims[li]
        w_self = 0.1 * jax.random.normal(keys[next(ki)], (din, h_feats),
                                         dtype=jnp.float32)
        w_neigh = 0.1 * jax.random.normal(keys[next(ki)], (din, h_feats),
                                          dtype=jnp.float32)
        bias = 0.01 * jax.random.normal(keys[next(ki)], (1, h_feats),
                                        dtype=jnp.float32)
        # PReLU default init: alpha = 0.25 per channel.
        prelu_alpha = jnp.full((1, h_feats), 0.25, dtype=jnp.float32)
        # BatchNorm1d eval-mode, folded into affine scale/shift.
        gamma = jnp.ones((1, h_feats), jnp.float32)
        beta = jnp.zeros((1, h_feats), jnp.float32)
        running_mean = jnp.zeros((1, h_feats), jnp.float32)
        running_var = jnp.ones((1, h_feats), jnp.float32)
        bn_scale = gamma / jnp.sqrt(running_var + eps)
        bn_shift = beta - running_mean * bn_scale
        params[name] = dict(
            # merged fc_self / fc_neigh weight, bf16 for the MXU
            w_cat=jnp.concatenate([w_self, w_neigh], axis=0).astype(jnp.bfloat16),
            bias=bias,
            bn_scale=bn_scale,
            alpha_scale=prelu_alpha * bn_scale,   # precomputed epilogue factor
            bn_shift=bn_shift,
        )
    return params


def build_graph(key, num_nodes, num_edges):
    """Random directed graph -> dense row-normalized adjacency (mean agg)."""
    ksrc, kdst = jax.random.split(key)
    src = jax.random.randint(ksrc, (num_edges,), 0, num_nodes)
    dst = jax.random.randint(kdst, (num_edges,), 0, num_nodes)
    A = jnp.zeros((num_nodes, num_nodes), jnp.float32)
    A = A.at[dst, src].add(1.0)
    deg = jnp.clip(jnp.sum(A, axis=1, keepdims=True), 1.0, None)
    return A / deg


# ---------------------------------------------------------------------------
if __name__ == "__main__":
    embedding_size = 32
    h_feats = 32
    num_nodes = 64
    num_edges = 256

    root = jax.random.PRNGKey(0)
    k_graph, k_feat, k_params = jax.random.split(root, 3)

    # Row-normalized adjacency in bf16 (normalization computed in f32).
    A = build_graph(k_graph, num_nodes, num_edges).astype(jnp.bfloat16)  # (N, N)
    in_feat = jax.random.randint(k_feat, (num_nodes,), 0, 257,
                                 dtype=jnp.int32)                        # (N,)
    params = init_params(k_params, embedding_size, h_feats)

    g_vec = gcn_forward(A, in_feat, params)
    g_vec = jax.block_until_ready(g_vec)

    assert g_vec.shape == (1, 4 * h_feats), g_vec.shape
    assert bool(jnp.all(jnp.isfinite(g_vec)))
    print("KERNEL_OK")
</pallas_src>

<mosaic_0001>
module attributes {stable_mosaic.version = 11 : i64} {
  func.func @gcn_fused_kernel(%arg0: memref<64x64xbf16, #tpu.memory_space<vmem>>, %arg1: memref<64x32xf32, #tpu.memory_space<vmem>>, %arg2: memref<64x32xbf16, #tpu.memory_space<vmem>>, %arg3: memref<1x32xf32, #tpu.memory_space<vmem>>, %arg4: memref<1x32xf32, #tpu.memory_space<vmem>>, %arg5: memref<1x32xf32, #tpu.memory_space<vmem>>, %arg6: memref<1x32xf32, #tpu.memory_space<vmem>>, %arg7: memref<64x32xbf16, #tpu.memory_space<vmem>>, %arg8: memref<1x32xf32, #tpu.memory_space<vmem>>, %arg9: memref<1x32xf32, #tpu.memory_space<vmem>>, %arg10: memref<1x32xf32, #tpu.memory_space<vmem>>, %arg11: memref<1x32xf32, #tpu.memory_space<vmem>>, %arg12: memref<64x32xbf16, #tpu.memory_space<vmem>>, %arg13: memref<1x32xf32, #tpu.memory_space<vmem>>, %arg14: memref<1x32xf32, #tpu.memory_space<vmem>>, %arg15: memref<1x32xf32, #tpu.memory_space<vmem>>, %arg16: memref<1x32xf32, #tpu.memory_space<vmem>>, %arg17: memref<64x32xbf16, #tpu.memory_space<vmem>>, %arg18: memref<1x32xf32, #tpu.memory_space<vmem>>, %arg19: memref<1x32xf32, #tpu.memory_space<vmem>>, %arg20: memref<1x32xf32, #tpu.memory_space<vmem>>, %arg21: memref<1x32xf32, #tpu.memory_space<vmem>>, %arg22: memref<1x128xf32, #tpu.memory_space<vmem>>, %arg23: memref<64x64xbf16, #tpu.memory_space<vmem>>) attributes {dimension_semantics = [], scalar_prefetch = 0 : i64, scratch_operands = 1 : i64, tpu.core_type = #tpu.core_type<tc>} {
    %c0 = arith.constant 0 : index
    %c0_0 = arith.constant 0 : index
    %0 = vector.load %arg0[%c0, %c0_0] : memref<64x64xbf16, #tpu.memory_space<vmem>>, vector<64x64xbf16>
    %c0_1 = arith.constant 0 : index
    %c0_2 = arith.constant 0 : index
    %1 = vector.load %arg1[%c0_1, %c0_2] : memref<64x32xf32, #tpu.memory_space<vmem>>, vector<64x32xf32>
    %2 = arith.truncf %1 : vector<64x32xf32> to vector<64x32xbf16>
    %cst = arith.constant dense<0.000000e+00> : vector<64x32xf32>
    %3 = tpu.matmul %0, %2, %cst {dimension_numbers = #tpu.dot_dimension_numbers<[1], [0], [0], [1], [0, 0, 1, 1], [], []>} : vector<64x64xbf16>, vector<64x32xbf16>, vector<64x32xf32> -> vector<64x32xf32>
    %c0_3 = arith.constant 0 : index
    %c0_4 = arith.constant 0 : index
    %4 = vector.load %arg23[%c0_3, %c0_4] : memref<64x64xbf16, #tpu.memory_space<vmem>>, vector<64x32xbf16>
    tpu.vector_store %arg23[%c0_3, %c0_4], %2 {strides = array<i32>} : memref<64x64xbf16, #tpu.memory_space<vmem>>, vector<64x32xbf16>,
    %5 = arith.truncf %3 : vector<64x32xf32> to vector<64x32xbf16>
    %c0_5 = arith.constant 0 : index
    %c32 = arith.constant 32 : index
    %6 = vector.load %arg23[%c0_5, %c32] : memref<64x64xbf16, #tpu.memory_space<vmem>>, vector<64x32xbf16>
    tpu.vector_store %arg23[%c0_5, %c32], %5 {strides = array<i32>} : memref<64x64xbf16, #tpu.memory_space<vmem>>, vector<64x32xbf16>,
    %c0_6 = arith.constant 0 : index
    %c0_7 = arith.constant 0 : index
    %7 = vector.load %arg23[%c0_6, %c0_7] : memref<64x64xbf16, #tpu.memory_space<vmem>>, vector<64x64xbf16>
    %c0_8 = arith.constant 0 : index
    %c0_9 = arith.constant 0 : index
    %8 = vector.load %arg2[%c0_8, %c0_9] : memref<64x32xbf16, #tpu.memory_space<vmem>>, vector<64x32xbf16>
    %cst_10 = arith.constant dense<0.000000e+00> : vector<64x32xf32>
    %9 = tpu.matmul %7, %8, %cst_10 {dimension_numbers = #tpu.dot_dimension_numbers<[1], [0], [0], [1], [0, 0, 1, 1], [], []>} : vector<64x64xbf16>, vector<64x32xbf16>, vector<64x32xf32> -> vector<64x32xf32>
    %c0_11 = arith.constant 0 : index
    %c0_12 = arith.constant 0 : index
    %10 = vector.load %arg3[%c0_11, %c0_12] : memref<1x32xf32, #tpu.memory_space<vmem>>, vector<1x32xf32>
    %11 = vector.broadcast %10 : vector<1x32xf32> to vector<64x32xf32>
    %12 = arith.addf %9, %11 : vector<64x32xf32>
    %cst_13 = arith.constant 0.000000e+00 : f32
    %13 = vector.broadcast %cst_13 : f32 to vector<64x32xf32>
    %14 = arith.cmpf ogt, %12, %13 : vector<64x32xf32>
    %c0_14 = arith.constant 0 : index
    %c0_15 = arith.constant 0 : index
    %15 = vector.load %arg4[%c0_14, %c0_15] : memref<1x32xf32, #tpu.memory_space<vmem>>, vector<1x32xf32>
    %16 = vector.broadcast %15 : vector<1x32xf32> to vector<64x32xf32>
    %17 = arith.mulf %16, %12 : vector<64x32xf32>
    %c0_16 = arith.constant 0 : index
    %c0_17 = arith.constant 0 : index
    %18 = vector.load %arg5[%c0_16, %c0_17] : memref<1x32xf32, #tpu.memory_space<vmem>>, vector<1x32xf32>
    %19 = vector.broadcast %18 : vector<1x32xf32> to vector<64x32xf32>
    %20 = arith.mulf %19, %12 : vector<64x32xf32>
    %21 = arith.select %14, %17, %20 : vector<64x32xi1>, vector<64x32xf32>
    %c0_18 = arith.constant 0 : index
    %c0_19 = arith.constant 0 : index
    %22 = vector.load %arg6[%c0_18, %c0_19] : memref<1x32xf32, #tpu.memory_space<vmem>>, vector<1x32xf32>
    %23 = vector.broadcast %22 : vector<1x32xf32> to vector<64x32xf32>
    %24 = arith.addf %21, %23 : vector<64x32xf32>
    %cst_20 = arith.constant dense<0.000000e+00> : vector<32xf32>
    %25 = vector.multi_reduction <add>, %24, %cst_20 [0] : vector<64x32xf32> to vector<32xf32>
    %26 = vector.shape_cast %25 : vector<32xf32> to vector<1x32xf32>
    %cst_21 = arith.constant 6.400000e+01 : f32
    %27 = vector.broadcast %cst_21 : f32 to vector<1x32xf32>
    %28 = arith.divf %26, %27 : vector<1x32xf32>
    %c0_22 = arith.constant 0 : index
    %c0_23 = arith.constant 0 : index
    %29 = vector.load %arg22[%c0_22, %c0_23] : memref<1x128xf32, #tpu.memory_space<vmem>>, vector<1x32xf32>
    tpu.vector_store %arg22[%c0_22, %c0_23], %28 {strides = array<i32>} : memref<1x128xf32, #tpu.memory_space<vmem>>, vector<1x32xf32>,
    %30 = arith.truncf %24 : vector<64x32xf32> to vector<64x32xbf16>
    %cst_24 = arith.constant dense<0.000000e+00> : vector<64x32xf32>
    %31 = tpu.matmul %0, %30, %cst_24 {dimension_numbers = #tpu.dot_dimension_numbers<[1], [0], [0], [1], [0, 0, 1, 1], [], []>} : vector<64x64xbf16>, vector<64x32xbf16>, vector<64x32xf32> -> vector<64x32xf32>
    %c0_25 = arith.constant 0 : index
    %c0_26 = arith.constant 0 : index
    %32 = vector.load %arg23[%c0_25, %c0_26] : memref<64x64xbf16, #tpu.memory_space<vmem>>, vector<64x32xbf16>
    tpu.vector_store %arg23[%c0_25, %c0_26], %30 {strides = array<i32>} : memref<64x64xbf16, #tpu.memory_space<vmem>>, vector<64x32xbf16>,
    %33 = arith.truncf %31 : vector<64x32xf32> to vector<64x32xbf16>
    %c0_27 = arith.constant 0 : index
    %c32_28 = arith.constant 32 : index
    %34 = vector.load %arg23[%c0_27, %c32_28] : memref<64x64xbf16, #tpu.memory_space<vmem>>, vector<64x32xbf16>
    tpu.vector_store %arg23[%c0_27, %c32_28], %33 {strides = array<i32>} : memref<64x64xbf16, #tpu.memory_space<vmem>>, vector<64x32xbf16>,
    %c0_29 = arith.constant 0 : index
    %c0_30 = arith.constant 0 : index
    %35 = vector.load %arg23[%c0_29, %c0_30] : memref<64x64xbf16, #tpu.memory_space<vmem>>, vector<64x64xbf16>
    %c0_31 = arith.constant 0 : index
    %c0_32 = arith.constant 0 : index
    %36 = vector.load %arg7[%c0_31, %c0_32] : memref<64x32xbf16, #tpu.memory_space<vmem>>, vector<64x32xbf16>
    %cst_33 = arith.constant dense<0.000000e+00> : vector<64x32xf32>
    %37 = tpu.matmul %35, %36, %cst_33 {dimension_numbers = #tpu.dot_dimension_numbers<[1], [0], [0], [1], [0, 0, 1, 1], [], []>} : vector<64x64xbf16>, vector<64x32xbf16>, vector<64x32xf32> -> vector<64x32xf32>
    %c0_34 = arith.constant 0 : index
    %c0_35 = arith.constant 0 : index
    %38 = vector.load %arg8[%c0_34, %c0_35] : memref<1x32xf32, #tpu.memory_space<vmem>>, vector<1x32xf32>
    %39 = vector.broadcast %38 : vector<1x32xf32> to vector<64x32xf32>
    %40 = arith.addf %37, %39 : vector<64x32xf32>
    %cst_36 = arith.constant 0.000000e+00 : f32
    %41 = vector.broadcast %cst_36 : f32 to vector<64x32xf32>
    %42 = arith.cmpf ogt, %40, %41 : vector<64x32xf32>
    %c0_37 = arith.constant 0 : index
    %c0_38 = arith.constant 0 : index
    %43 = vector.load %arg9[%c0_37, %c0_38] : memref<1x32xf32, #tpu.memory_space<vmem>>, vector<1x32xf32>
    %44 = vector.broadcast %43 : vector<1x32xf32> to vector<64x32xf32>
    %45 = arith.mulf %44, %40 : vector<64x32xf32>
    %c0_39 = arith.constant 0 : index
    %c0_40 = arith.constant 0 : index
    %46 = vector.load %arg10[%c0_39, %c0_40] : memref<1x32xf32, #tpu.memory_space<vmem>>, vector<1x32xf32>
    %47 = vector.broadcast %46 : vector<1x32xf32> to vector<64x32xf32>
    %48 = arith.mulf %47, %40 : vector<64x32xf32>
    %49 = arith.select %42, %45, %48 : vector<64x32xi1>, vector<64x32xf32>
    %c0_41 = arith.constant 0 : index
    %c0_42 = arith.constant 0 : index
    %50 = vector.load %arg11[%c0_41, %c0_42] : memref<1x32xf32, #tpu.memory_space<vmem>>, vector<1x32xf32>
    %51 = vector.broadcast %50 : vector<1x32xf32> to vector<64x32xf32>
    %52 = arith.addf %49, %51 : vector<64x32xf32>
    %cst_43 = arith.constant dense<0.000000e+00> : vector<32xf32>
    %53 = vector.multi_reduction <add>, %52, %cst_43 [0] : vector<64x32xf32> to vector<32xf32>
    %54 = vector.shape_cast %53 : vector<32xf32> to vector<1x32xf32>
    %cst_44 = arith.constant 6.400000e+01 : f32
    %55 = vector.broadcast %cst_44 : f32 to vector<1x32xf32>
    %56 = arith.divf %54, %55 : vector<1x32xf32>
    %c0_45 = arith.constant 0 : index
    %c32_46 = arith.constant 32 : index
    %57 = vector.load %arg22[%c0_45, %c32_46] : memref<1x128xf32, #tpu.memory_space<vmem>>, vector<1x32xf32>
    tpu.vector_store %arg22[%c0_45, %c32_46], %56 {strides = array<i32>} : memref<1x128xf32, #tpu.memory_space<vmem>>, vector<1x32xf32>,
    %58 = arith.truncf %52 : vector<64x32xf32> to vector<64x32xbf16>
    %cst_47 = arith.constant dense<0.000000e+00> : vector<64x32xf32>
    %59 = tpu.matmul %0, %58, %cst_47 {dimension_numbers = #tpu.dot_dimension_numbers<[1], [0], [0], [1], [0, 0, 1, 1], [], []>} : vector<64x64xbf16>, vector<64x32xbf16>, vector<64x32xf32> -> vector<64x32xf32>
    %c0_48 = arith.constant 0 : index
    %c0_49 = arith.constant 0 : index
    %60 = vector.load %arg23[%c0_48, %c0_49] : memref<64x64xbf16, #tpu.memory_space<vmem>>, vector<64x32xbf16>
    tpu.vector_store %arg23[%c0_48, %c0_49], %58 {strides = array<i32>} : memref<64x64xbf16, #tpu.memory_space<vmem>>, vector<64x32xbf16>,
    %61 = arith.truncf %59 : vector<64x32xf32> to vector<64x32xbf16>
    %c0_50 = arith.constant 0 : index
    %c32_51 = arith.constant 32 : index
    %62 = vector.load %arg23[%c0_50, %c32_51] : memref<64x64xbf16, #tpu.memory_space<vmem>>, vector<64x32xbf16>
    tpu.vector_store %arg23[%c0_50, %c32_51], %61 {strides = array<i32>} : memref<64x64xbf16, #tpu.memory_space<vmem>>, vector<64x32xbf16>,
    %c0_52 = arith.constant 0 : index
    %c0_53 = arith.constant 0 : index
    %63 = vector.load %arg23[%c0_52, %c0_53] : memref<64x64xbf16, #tpu.memory_space<vmem>>, vector<64x64xbf16>
    %c0_54 = arith.constant 0 : index
    %c0_55 = arith.constant 0 : index
    %64 = vector.load %arg12[%c0_54, %c0_55] : memref<64x32xbf16, #tpu.memory_space<vmem>>, vector<64x32xbf16>
    %cst_56 = arith.constant dense<0.000000e+00> : vector<64x32xf32>
    %65 = tpu.matmul %63, %64, %cst_56 {dimension_numbers = #tpu.dot_dimension_numbers<[1], [0], [0], [1], [0, 0, 1, 1], [], []>} : vector<64x64xbf16>, vector<64x32xbf16>, vector<64x32xf32> -> vector<64x32xf32>
    %c0_57 = arith.constant 0 : index
    %c0_58 = arith.constant 0 : index
    %66 = vector.load %arg13[%c0_57, %c0_58] : memref<1x32xf32, #tpu.memory_space<vmem>>, vector<1x32xf32>
    %67 = vector.broadcast %66 : vector<1x32xf32> to vector<64x32xf32>
    %68 = arith.addf %65, %67 : vector<64x32xf32>
    %cst_59 = arith.constant 0.000000e+00 : f32
    %69 = vector.broadcast %cst_59 : f32 to vector<64x32xf32>
    %70 = arith.cmpf ogt, %68, %69 : vector<64x32xf32>
    %c0_60 = arith.constant 0 : index
    %c0_61 = arith.constant 0 : index
    %71 = vector.load %arg14[%c0_60, %c0_61] : memref<1x32xf32, #tpu.memory_space<vmem>>, vector<1x32xf32>
    %72 = vector.broadcast %71 : vector<1x32xf32> to vector<64x32xf32>
    %73 = arith.mulf %72, %68 : vector<64x32xf32>
    %c0_62 = arith.constant 0 : index
    %c0_63 = arith.constant 0 : index
    %74 = vector.load %arg15[%c0_62, %c0_63] : memref<1x32xf32, #tpu.memory_space<vmem>>, vector<1x32xf32>
    %75 = vector.broadcast %74 : vector<1x32xf32> to vector<64x32xf32>
    %76 = arith.mulf %75, %68 : vector<64x32xf32>
    %77 = arith.select %70, %73, %76 : vector<64x32xi1>, vector<64x32xf32>
    %c0_64 = arith.constant 0 : index
    %c0_65 = arith.constant 0 : index
    %78 = vector.load %arg16[%c0_64, %c0_65] : memref<1x32xf32, #tpu.memory_space<vmem>>, vector<1x32xf32>
    %79 = vector.broadcast %78 : vector<1x32xf32> to vector<64x32xf32>
    %80 = arith.addf %77, %79 : vector<64x32xf32>
    %cst_66 = arith.constant dense<0.000000e+00> : vector<32xf32>
    %81 = vector.multi_reduction <add>, %80, %cst_66 [0] : vector<64x32xf32> to vector<32xf32>
    %82 = vector.shape_cast %81 : vector<32xf32> to vector<1x32xf32>
    %cst_67 = arith.constant 6.400000e+01 : f32
    %83 = vector.broadcast %cst_67 : f32 to vector<1x32xf32>
    %84 = arith.divf %82, %83 : vector<1x32xf32>
    %c0_68 = arith.constant 0 : index
    %c64 = arith.constant 64 : index
    %85 = vector.load %arg22[%c0_68, %c64] : memref<1x128xf32, #tpu.memory_space<vmem>>, vector<1x32xf32>
    tpu.vector_store %arg22[%c0_68, %c64], %84 {strides = array<i32>} : memref<1x128xf32, #tpu.memory_space<vmem>>, vector<1x32xf32>,
    %86 = arith.truncf %80 : vector<64x32xf32> to vector<64x32xbf16>
    %cst_69 = arith.constant dense<0.000000e+00> : vector<64x32xf32>
    %87 = tpu.matmul %0, %86, %cst_69 {dimension_numbers = #tpu.dot_dimension_numbers<[1], [0], [0], [1], [0, 0, 1, 1], [], []>} : vector<64x64xbf16>, vector<64x32xbf16>, vector<64x32xf32> -> vector<64x32xf32>
    %c0_70 = arith.constant 0 : index
    %c0_71 = arith.constant 0 : index
    %88 = vector.load %arg23[%c0_70, %c0_71] : memref<64x64xbf16, #tpu.memory_space<vmem>>, vector<64x32xbf16>
    tpu.vector_store %arg23[%c0_70, %c0_71], %86 {strides = array<i32>} : memref<64x64xbf16, #tpu.memory_space<vmem>>, vector<64x32xbf16>,
    %89 = arith.truncf %87 : vector<64x32xf32> to vector<64x32xbf16>
    %c0_72 = arith.constant 0 : index
    %c32_73 = arith.constant 32 : index
    %90 = vector.load %arg23[%c0_72, %c32_73] : memref<64x64xbf16, #tpu.memory_space<vmem>>, vector<64x32xbf16>
    tpu.vector_store %arg23[%c0_72, %c32_73], %89 {strides = array<i32>} : memref<64x64xbf16, #tpu.memory_space<vmem>>, vector<64x32xbf16>,
    %c0_74 = arith.constant 0 : index
    %c0_75 = arith.constant 0 : index
    %91 = vector.load %arg23[%c0_74, %c0_75] : memref<64x64xbf16, #tpu.memory_space<vmem>>, vector<64x64xbf16>
    %c0_76 = arith.constant 0 : index
    %c0_77 = arith.constant 0 : index
    %92 = vector.load %arg17[%c0_76, %c0_77] : memref<64x32xbf16, #tpu.memory_space<vmem>>, vector<64x32xbf16>
    %cst_78 = arith.constant dense<0.000000e+00> : vector<64x32xf32>
    %93 = tpu.matmul %91, %92, %cst_78 {dimension_numbers = #tpu.dot_dimension_numbers<[1], [0], [0], [1], [0, 0, 1, 1], [], []>} : vector<64x64xbf16>, vector<64x32xbf16>, vector<64x32xf32> -> vector<64x32xf32>
    %c0_79 = arith.constant 0 : index
    %c0_80 = arith.constant 0 : index
    %94 = vector.load %arg18[%c0_79, %c0_80] : memref<1x32xf32, #tpu.memory_space<vmem>>, vector<1x32xf32>
    %95 = vector.broadcast %94 : vector<1x32xf32> to vector<64x32xf32>
    %96 = arith.addf %93, %95 : vector<64x32xf32>
    %cst_81 = arith.constant 0.000000e+00 : f32
    %97 = vector.broadcast %cst_81 : f32 to vector<64x32xf32>
    %98 = arith.cmpf ogt, %96, %97 : vector<64x32xf32>
    %c0_82 = arith.constant 0 : index
    %c0_83 = arith.constant 0 : index
    %99 = vector.load %arg19[%c0_82, %c0_83] : memref<1x32xf32, #tpu.memory_space<vmem>>, vector<1x32xf32>
    %100 = vector.broadcast %99 : vector<1x32xf32> to vector<64x32xf32>
    %101 = arith.mulf %100, %96 : vector<64x32xf32>
    %c0_84 = arith.constant 0 : index
    %c0_85 = arith.constant 0 : index
    %102 = vector.load %arg20[%c0_84, %c0_85] : memref<1x32xf32, #tpu.memory_space<vmem>>, vector<1x32xf32>
    %103 = vector.broadcast %102 : vector<1x32xf32> to vector<64x32xf32>
    %104 = arith.mulf %103, %96 : vector<64x32xf32>
    %105 = arith.select %98, %101, %104 : vector<64x32xi1>, vector<64x32xf32>
    %c0_86 = arith.constant 0 : index
    %c0_87 = arith.constant 0 : index
    %106 = vector.load %arg21[%c0_86, %c0_87] : memref<1x32xf32, #tpu.memory_space<vmem>>, vector<1x32xf32>
    %107 = vector.broadcast %106 : vector<1x32xf32> to vector<64x32xf32>
    %108 = arith.addf %105, %107 : vector<64x32xf32>
    %cst_88 = arith.constant dense<0.000000e+00> : vector<32xf32>
    %109 = vector.multi_reduction <add>, %108, %cst_88 [0] : vector<64x32xf32> to vector<32xf32>
    %110 = vector.shape_cast %109 : vector<32xf32> to vector<1x32xf32>
    %cst_89 = arith.constant 6.400000e+01 : f32
    %111 = vector.broadcast %cst_89 : f32 to vector<1x32xf32>
    %112 = arith.divf %110, %111 : vector<1x32xf32>
    %c0_90 = arith.constant 0 : index
    %c96 = arith.constant 96 : index
    %113 = vector.load %arg22[%c0_90, %c96] : memref<1x128xf32, #tpu.memory_space<vmem>>, vector<1x32xf32>
    tpu.vector_store %arg22[%c0_90, %c96], %112 {strides = array<i32>} : memref<1x128xf32, #tpu.memory_space<vmem>>, vector<1x32xf32>,
    return
  }
}

</mosaic_0001>

<llo_original>
// kernel: gcn_forward.1
$region0: #{gcn_forward.1}
  #allocation0 [shape = 'u32[]', space=smem, size = 0x4, offset = 0x4, fixed_abs, tag = 'smem constant byte address 0x4 - core index']
  #allocation1 [shape = 'u32[144,128]{1,0:T(1,128)}', space=vmem, size = 0x12000, scoped, tag = 'internal scratch']
  #allocation2 [shape = 'bf16[64,64]{1,0:T(16,128)(2,1)}', space=vmem, size = 0x4000, scoped, tag = 'scratch operand']
  %s0 = inlined_call_operand.vmem [shape: bf16[64,64], index: 0, kind: input, shape index: {}]
  %s1 = inlined_call_operand.vmem [shape: f32[64,32], index: 1, kind: input, shape index: {}]
  %s2 = inlined_call_operand.vmem [shape: bf16[64,32], index: 2, kind: input, shape index: {}]
  %s3 = inlined_call_operand.vmem [shape: f32[1,32], index: 3, kind: input, shape index: {}]
  %s4 = inlined_call_operand.vmem [shape: f32[1,32], index: 4, kind: input, shape index: {}]
  %s5 = inlined_call_operand.vmem [shape: f32[1,32], index: 5, kind: input, shape index: {}]
  %s6 = inlined_call_operand.vmem [shape: f32[1,32], index: 6, kind: input, shape index: {}]
  %s7 = inlined_call_operand.vmem [shape: bf16[64,32], index: 7, kind: input, shape index: {}]
  %s8 = inlined_call_operand.vmem [shape: f32[1,32], index: 8, kind: input, shape index: {}]
  %s9 = inlined_call_operand.vmem [shape: f32[1,32], index: 9, kind: input, shape index: {}]
  %s10 = inlined_call_operand.vmem [shape: f32[1,32], index: 10, kind: input, shape index: {}]
  %s11 = inlined_call_operand.vmem [shape: f32[1,32], index: 11, kind: input, shape index: {}]
  %s12 = inlined_call_operand.vmem [shape: bf16[64,32], index: 12, kind: input, shape index: {}]
  %s13 = inlined_call_operand.vmem [shape: f32[1,32], index: 13, kind: input, shape index: {}]
  %s14 = inlined_call_operand.vmem [shape: f32[1,32], index: 14, kind: input, shape index: {}]
  %s15 = inlined_call_operand.vmem [shape: f32[1,32], index: 15, kind: input, shape index: {}]
  %s16 = inlined_call_operand.vmem [shape: f32[1,32], index: 16, kind: input, shape index: {}]
  %s17 = inlined_call_operand.vmem [shape: bf16[64,32], index: 17, kind: input, shape index: {}]
  %s18 = inlined_call_operand.vmem [shape: f32[1,32], index: 18, kind: input, shape index: {}]
  %s19 = inlined_call_operand.vmem [shape: f32[1,32], index: 19, kind: input, shape index: {}]
  %s20 = inlined_call_operand.vmem [shape: f32[1,32], index: 20, kind: input, shape index: {}]
  %s21 = inlined_call_operand.vmem [shape: f32[1,32], index: 21, kind: input, shape index: {}]
  %s22 = inlined_call_operand.hbm [shape: f32[1,128], index: 22, kind: output, shape index: {}]
  %s23 = sld [smem:[#allocation0]]
  $region98: #{gcn_forward.1} parent=0
    _
  %s25 = ssub.s32 1, %s23
  %s26 = scalar_select 0, %s25, %s23
  $region1: #{gcn_forward.1} parent=0
    #allocation3 [shape = 'u8[512]{0}', space=vmem, size = 0x400, scoped, tag = 'output window, operand 0, single buffered']
    #allocation4 [shape = 's32[1]{0}', space=sflag, size = 0x4, scoped, tag = 'scoped memory for gcn_forward.1']
    %27 = vsyncpa [#allocation4], 0
    // Predicated region
    $region2: #{gcn_forward.1} parent=1 // pred_check
      _
    $region3: #{gcn_forward.1} parent=1 // pred_check_branch
      %29 = sbr.rel (0) target = $region5
    $region4: #{gcn_forward.1} parent=1 // pred_region
      _
    $region5: #{gcn_forward.1} parent=1 // pred_fallthru
      _
    // Predicated region
    $region6: #{gcn_forward.1} parent=1 // pred_check
      _
    $region7: #{gcn_forward.1} parent=1 // pred_check_branch
      %31 = sbr.rel (0) target = $region9
    $region8: #{gcn_forward.1} parent=1 // pred_region
      _
    $region9: #{gcn_forward.1} parent=1 // pred_fallthru
      _
    // Predicated region
    $region10: #{gcn_forward.1} parent=1 // pred_check
      _
    $region11: #{gcn_forward.1} parent=1 // pred_check_branch
      %33 = sbr.rel (0) target = $region13
    $region12: #{gcn_forward.1} parent=1 // pred_region
      _
    $region13: #{gcn_forward.1} parent=1 // pred_fallthru
      _
    // Predicated region
    $region14: #{gcn_forward.1} parent=1 // pred_check
      _
    $region15: #{gcn_forward.1} parent=1 // pred_check_branch
      %35 = sbr.rel (0) target = $region17
    $region16: #{gcn_forward.1} parent=1 // pred_region
      _
    $region17: #{gcn_forward.1} parent=1 // pred_fallthru
      _
    // Predicated region
    $region18: #{gcn_forward.1} parent=1 // pred_check
      _
    $region19: #{gcn_forward.1} parent=1 // pred_check_branch
      %37 = sbr.rel (0) target = $region21
    $region20: #{gcn_forward.1} parent=1 // pred_region
      _
    $region21: #{gcn_forward.1} parent=1 // pred_fallthru
      _
    // Predicated region
    $region22: #{gcn_forward.1} parent=1 // pred_check
      _
    $region23: #{gcn_forward.1} parent=1 // pred_check_branch
      %39 = sbr.rel (0) target = $region25
    $region24: #{gcn_forward.1} parent=1 // pred_region
      _
    $region25: #{gcn_forward.1} parent=1 // pred_fallthru
      _
    // Predicated region
    $region26: #{gcn_forward.1} parent=1 // pred_check
      _
    $region27: #{gcn_forward.1} parent=1 // pred_check_branch
      %41 = sbr.rel (0) target = $region29
    $region28: #{gcn_forward.1} parent=1 // pred_region
      _
    $region29: #{gcn_forward.1} parent=1 // pred_fallthru
      _
    // Predicated region
    $region30: #{gcn_forward.1} parent=1 // pred_check
      _
    $region31: #{gcn_forward.1} parent=1 // pred_check_branch
      %43 = sbr.rel (0) target = $region33
    $region32: #{gcn_forward.1} parent=1 // pred_region
      _
    $region33: #{gcn_forward.1} parent=1 // pred_fallthru
      _
    // Predicated region
    $region34: #{gcn_forward.1} parent=1 // pred_check
      _
    $region35: #{gcn_forward.1} parent=1 // pred_check_branch
      %45 = sbr.rel (0) target = $region37
    $region36: #{gcn_forward.1} parent=1 // pred_region
      _
    $region37: #{gcn_forward.1} parent=1 // pred_fallthru
      _
    // Predicated region
    $region38: #{gcn_forward.1} parent=1 // pred_check
      _
    $region39: #{gcn_forward.1} parent=1 // pred_check_branch
      %47 = sbr.rel (0) target = $region41
    $region40: #{gcn_forward.1} parent=1 // pred_region
      _
    $region41: #{gcn_forward.1} parent=1 // pred_fallthru
      _
    // Predicated region
    $region42: #{gcn_forward.1} parent=1 // pred_check
      _
    $region43: #{gcn_forward.1} parent=1 // pred_check_branch
      %49 = sbr.rel (0) target = $region45
    $region44: #{gcn_forward.1} parent=1 // pred_region
      _
    $region45: #{gcn_forward.1} parent=1 // pred_fallthru
      _
    // Predicated region
    $region46: #{gcn_forward.1} parent=1 // pred_check
      _
    $region47: #{gcn_forward.1} parent=1 // pred_check_branch
      %51 = sbr.rel (0) target = $region49
    $region48: #{gcn_forward.1} parent=1 // pred_region
      _
    $region49: #{gcn_forward.1} parent=1 // pred_fallthru
      _
    // Predicated region
    $region50: #{gcn_forward.1} parent=1 // pred_check
      _
    $region51: #{gcn_forward.1} parent=1 // pred_check_branch
      %53 = sbr.rel (0) target = $region53
    $region52: #{gcn_forward.1} parent=1 // pred_region
      _
    $region53: #{gcn_forward.1} parent=1 // pred_fallthru
      _
    // Predicated region
    $region54: #{gcn_forward.1} parent=1 // pred_check
      _
    $region55: #{gcn_forward.1} parent=1 // pred_check_branch
      %55 = sbr.rel (0) target = $region57
    $region56: #{gcn_forward.1} parent=1 // pred_region
      _
    $region57: #{gcn_forward.1} parent=1 // pred_fallthru
      _
    // Predicated region
    $region58: #{gcn_forward.1} parent=1 // pred_check
      _
    $region59: #{gcn_forward.1} parent=1 // pred_check_branch
      %57 = sbr.rel (0) target = $region61
    $region60: #{gcn_forward.1} parent=1 // pred_region
      _
    $region61: #{gcn_forward.1} parent=1 // pred_fallthru
      _
    // Predicated region
    $region62: #{gcn_forward.1} parent=1 // pred_check
      _
    $region63: #{gcn_forward.1} parent=1 // pred_check_branch
      %59 = sbr.rel (0) target = $region65
    $region64: #{gcn_forward.1} parent=1 // pred_region
      _
    $region65: #{gcn_forward.1} parent=1 // pred_fallthru
      _
    // Predicated region
    $region66: #{gcn_forward.1} parent=1 // pred_check
      _
    $region67: #{gcn_forward.1} parent=1 // pred_check_branch
      %61 = sbr.rel (0) target = $region69
    $region68: #{gcn_forward.1} parent=1 // pred_region
      _
    $region69: #{gcn_forward.1} parent=1 // pred_fallthru
      _
    // Predicated region
    $region70: #{gcn_forward.1} parent=1 // pred_check
      _
    $region71: #{gcn_forward.1} parent=1 // pred_check_branch
      %63 = sbr.rel (0) target = $region73
    $region72: #{gcn_forward.1} parent=1 // pred_region
      _
    $region73: #{gcn_forward.1} parent=1 // pred_fallthru
      _
    // Predicated region
    $region74: #{gcn_forward.1} parent=1 // pred_check
      _
    $region75: #{gcn_forward.1} parent=1 // pred_check_branch
      %65 = sbr.rel (0) target = $region77
    $region76: #{gcn_forward.1} parent=1 // pred_region
      _
    $region77: #{gcn_forward.1} parent=1 // pred_fallthru
      _
    // Predicated region
    $region78: #{gcn_forward.1} parent=1 // pred_check
      _
    $region79: #{gcn_forward.1} parent=1 // pred_check_branch
      %67 = sbr.rel (0) target = $region81
    $region80: #{gcn_forward.1} parent=1 // pred_region
      _
    $region81: #{gcn_forward.1} parent=1 // pred_fallthru
      _
    // Predicated region
    $region82: #{gcn_forward.1} parent=1 // pred_check
      _
    $region83: #{gcn_forward.1} parent=1 // pred_check_branch
      %69 = sbr.rel (0) target = $region85
    $region84: #{gcn_forward.1} parent=1 // pred_region
      _
    $region85: #{gcn_forward.1} parent=1 // pred_fallthru
      _
    // Predicated region
    $region86: #{gcn_forward.1} parent=1 // pred_check
      _
    $region87: #{gcn_forward.1} parent=1 // pred_check_branch
      %71 = sbr.rel (0) target = $region89
    $region88: #{gcn_forward.1} parent=1 // pred_region
      _
    $region89: #{gcn_forward.1} parent=1 // pred_fallthru
      _
    %v73 = vld [vmem:[%s0] sm:$0xf]
    %v74 = vld [vmem:[%s0 + $0x4] sm:$0xf]
    %v75 = vld [vmem:[%s0 + $0x8] sm:$0xf]
    %v76 = vld [vmem:[%s0 + $0xc] sm:$0xf]
    %v77 = vld [vmem:[%s0 + $0x10] sm:$0xf]
    %v78 = vld [vmem:[%s0 + $0x14] sm:$0xf]
    %v79 = vld [vmem:[%s0 + $0x18] sm:$0xf]
    %v80 = vld [vmem:[%s0 + $0x1c] sm:$0xf]
    %v81 = vld [vmem:[%s1] sm:$0xff]
    %v82 = vld [vmem:[%s1 + $0x8] sm:$0xff]
    %v83 = vld [vmem:[%s1 + $0x10] sm:$0xff]
    %v84 = vld [vmem:[%s1 + $0x18] sm:$0xff]
    %v85 = vld [vmem:[%s1 + $0x20] sm:$0xff]
    %v86 = vld [vmem:[%s1 + $0x28] sm:$0xff]
    %v87 = vld [vmem:[%s1 + $0x30] sm:$0xff]
    %v88 = vld [vmem:[%s1 + $0x38] sm:$0xff]
    %v89 = vpack.c.bf16 %v82, %v81
    %v90 = vpack.c.bf16 %v84, %v83
    %v91 = vpack.c.bf16 %v86, %v85
    %v92 = vpack.c.bf16 %v88, %v87
    %v101 = vunpack.c.l.b16 %v73
    %v102 = vunpack.c.l.b16 %v74
    %v103 = vunpack.c.l.b16 %v75
    %v104 = vunpack.c.l.b16 %v76
    %v105 = vunpack.c.l.b16 %v77
    %v106 = vunpack.c.l.b16 %v78
    %v107 = vunpack.c.l.b16 %v79
    %v108 = vunpack.c.l.b16 %v80
    %v109 = vpack.c.b16 %v102, %v101
    %v110 = vpack.c.b16 %v104, %v103
    %v111 = vpack.c.b16 %v106, %v105
    %v112 = vpack.c.b16 %v108, %v107
    %vm113 = vcmask 523264
    %v115 = vsel %vm113, %v109, 0
    %v118 = vsel %vm113, %v110, 0
    %v121 = vsel %vm113, %v111, 0
    %v124 = vsel %vm113, %v112, 0
    %126 = vmatprep.subr.bf16.mxu0 0
    %127 = vmatpush1.bf16.msra.mxu0 %v89
    %128 = vmatprep.subr.bf16.mxu0 0
    %129 = vmatpush1.bf16.msra.mxu0 %v90
    %130 = vmatprep.subr.bf16.mxu0 0
    %131 = vmatpush1.bf16.msra.mxu0 %v91
    %132 = vmatprep.subr.bf16.mxu0 0
    %133 = vmatpush1.bf16.msra.mxu0 %v92
    %134 = vmatprep.subr.bf16.mxu0 0
    %135 = vmatpush1.bf16.msra.mxu0 0
    %136 = vmatprep.subr.bf16.mxu0 0
    %137 = vmatpush1.bf16.msra.mxu0 0
    %138 = vmatprep.subr.bf16.mxu0 0
    %139 = vmatpush1.bf16.msra.mxu0 0
    %140 = vmatprep.subr.bf16.mxu0 0
    %141 = vmatpush1.bf16.msra.mxu0 0
    %142 = vmatprep.subr.bf16.mxu0 0
    %143 = vmatpush1.bf16.msra.mxu0 0
    %144 = vmatprep.subr.bf16.mxu0 0
    %145 = vmatpush1.bf16.msra.mxu0 0
    %146 = vmatprep.subr.bf16.mxu0 0
    %147 = vmatpush1.bf16.msra.mxu0 0
    %148 = vmatprep.subr.bf16.mxu0 0
    %149 = vmatpush1.bf16.msra.mxu0 0
    %150 = vmatprep.subr.bf16.mxu0 0
    %151 = vmatpush1.bf16.msra.mxu0 0
    %152 = vmatprep.subr.bf16.mxu0 0
    %153 = vmatpush1.bf16.msra.mxu0 0
    %154 = vmatprep.subr.bf16.mxu0 0
    %155 = vmatpush1.bf16.msra.mxu0 0
    %156 = vmatprep.subr.bf16.mxu0 0
    %157 = vmatpush1.bf16.msra.mxu0 0
    %158 = vmatprep.mubr.bf16.mxu0 0
    %159 = vmatmul.mubr.bf16.gmra.mrb[0].mxu0 %v115
    %v160 = vpop.f32.mrb[0].mxu0
    %v161 = vadd.f32 0.0, %v160
    %v162 = vpop.f32.mrb[0].mxu0
    %v163 = vpop.f32.mrb[0].mxu0
    %v164 = vadd.f32 0.0, %v163
    %v165 = vpop.f32.mrb[0].mxu0
    %166 = vmatprep.mubr.bf16.mxu0 0
    %167 = vmatmul.mubr.bf16.gmra.mrb[0].mxu0 %v118
    %v168 = vpop.f32.mrb[0].mxu0
    %v169 = vadd.f32 0.0, %v168
    %v170 = vpop.f32.mrb[0].mxu0
    %v171 = vpop.f32.mrb[0].mxu0
    %v172 = vadd.f32 0.0, %v171
    %v173 = vpop.f32.mrb[0].mxu0
    %174 = vmatprep.mubr.bf16.mxu0 0
    %175 = vmatmul.mubr.bf16.gmra.mrb[0].mxu0 %v121
    %v176 = vpop.f32.mrb[0].mxu0
    %v177 = vadd.f32 0.0, %v176
    %v178 = vpop.f32.mrb[0].mxu0
    %v179 = vpop.f32.mrb[0].mxu0
    %v180 = vadd.f32 0.0, %v179
    %v181 = vpop.f32.mrb[0].mxu0
    %182 = vmatprep.mubr.bf16.mxu0 0
    %183 = vmatmul.mubr.bf16.gmra.mrb[0].mxu0 %v124
    %v184 = vpop.f32.mrb[0].mxu0
    %v185 = vadd.f32 0.0, %v184
    %v186 = vpop.f32.mrb[0].mxu0
    %v187 = vpop.f32.mrb[0].mxu0
    %v188 = vadd.f32 0.0, %v187
    %v189 = vpop.f32.mrb[0].mxu0
    %190 = vdwg.mxu0
    %vm191 = vcmask 261120
    %192 = vst.msk [vmem:[#allocation2] sm:$0xff] %vm191, %v89
    %193 = vst.msk [vmem:[#allocation2 + $0x8] sm:$0xff] %vm191, %v90
    %194 = vst.msk [vmem:[#allocation2 + $0x10] sm:$0xff] %vm191, %v91
    %195 = vst.msk [vmem:[#allocation2 + $0x18] sm:$0xff] %vm191, %v92
    %v196 = vpack.c.bf16 %v164, %v161
    %v197 = vpack.c.bf16 %v172, %v169
    %v198 = vpack.c.bf16 %v180, %v177
    %v199 = vpack.c.bf16 %v188, %v185
    %204 = vrot.lane.b32.xlu0 %v196, 32
    %v205 = vpop.permute.xlu0 %204
    %206 = vrot.lane.b32.xlu0 %v197, 32
    %v207 = vpop.permute.xlu0 %206
    %208 = vrot.lane.b32.xlu0 %v198, 32
    %v209 = vpop.permute.xlu0 %208
    %210 = vrot.lane.b32.xlu0 %v199, 32
    %v211 = vpop.permute.xlu0 %210
    %vm216 = vcmask 523520
    %217 = vst.msk [vmem:[#allocation2] sm:$0xff] %vm216, %v205
    %218 = vst.msk [vmem:[#allocation2 + $0x8] sm:$0xff] %vm216, %v207
    %219 = vst.msk [vmem:[#allocation2 + $0x10] sm:$0xff] %vm216, %v209
    %220 = vst.msk [vmem:[#allocation2 + $0x18] sm:$0xff] %vm216, %v211
    %v221 = vld [vmem:[#allocation2] sm:$0xff]
    %v222 = vld [vmem:[#allocation2 + $0x8] sm:$0xff]
    %v223 = vld [vmem:[#allocation2 + $0x10] sm:$0xff]
    %v224 = vld [vmem:[#allocation2 + $0x18] sm:$0xff]
    %v225 = vld [vmem:[%s2] sm:$0xf]
    %v226 = vld [vmem:[%s2 + $0x4] sm:$0xf]
    %v227 = vld [vmem:[%s2 + $0x8] sm:$0xf]
    %v228 = vld [vmem:[%s2 + $0xc] sm:$0xf]
    %v229 = vld [vmem:[%s2 + $0x10] sm:$0xf]
    %v230 = vld [vmem:[%s2 + $0x14] sm:$0xf]
    %v231 = vld [vmem:[%s2 + $0x18] sm:$0xf]
    %v232 = vld [vmem:[%s2 + $0x1c] sm:$0xf]
    %v233 = vld [vmem:[%s3] sm:$0x1]
    %v235 = vlaneseq
    %v236 = vshrl.u32 %v235, 7
    %v237 = vsub.s32 0, %v236
    %v238 = vrot.slane %v233, %v237
    %v248 = vunpack.c.l.b16 %v225
    %v249 = vunpack.c.l.b16 %v226
    %v250 = vunpack.c.l.b16 %v227
    %v251 = vunpack.c.l.b16 %v228
    %v252 = vunpack.c.l.b16 %v229
    %v253 = vunpack.c.l.b16 %v230
    %v254 = vunpack.c.l.b16 %v231
    %v255 = vunpack.c.l.b16 %v232
    %v256 = vpack.c.b16 %v249, %v248
    %v257 = vpack.c.b16 %v251, %v250
    %v258 = vpack.c.b16 %v253, %v252
    %v259 = vpack.c.b16 %v255, %v254
    %v265 = vsel %vm113, %v221, 0
    %v268 = vsel %vm113, %v222, 0
    %v271 = vsel %vm113, %v223, 0
    %v274 = vsel %vm113, %v224, 0
    %276 = vmatprep.subr.bf16.mxu0 0
    %277 = vmatpush1.bf16.msra.mxu0 %v256
    %278 = vmatprep.subr.bf16.mxu0 0
    %279 = vmatpush1.bf16.msra.mxu0 %v257
    %280 = vmatprep.subr.bf16.mxu0 0
    %281 = vmatpush1.bf16.msra.mxu0 %v258
    %282 = vmatprep.subr.bf16.mxu0 0
    %283 = vmatpush1.bf16.msra.mxu0 %v259
    %284 = vmatprep.subr.bf16.mxu0 0
    %285 = vmatpush1.bf16.msra.mxu0 0
    %286 = vmatprep.subr.bf16.mxu0 0
    %287 = vmatpush1.bf16.msra.mxu0 0
    %288 = vmatprep.subr.bf16.mxu0 0
    %289 = vmatpush1.bf16.msra.mxu0 0
    %290 = vmatprep.subr.bf16.mxu0 0
    %291 = vmatpush1.bf16.msra.mxu0 0
    %292 = vmatprep.subr.bf16.mxu0 0
    %293 = vmatpush1.bf16.msra.mxu0 0
    %294 = vmatprep.subr.bf16.mxu0 0
    %295 = vmatpush1.bf16.msra.mxu0 0
    %296 = vmatprep.subr.bf16.mxu0 0
    %297 = vmatpush1.bf16.msra.mxu0 0
    %298 = vmatprep.subr.bf16.mxu0 0
    %299 = vmatpush1.bf16.msra.mxu0 0
    %300 = vmatprep.subr.bf16.mxu0 0
    %301 = vmatpush1.bf16.msra.mxu0 0
    %302 = vmatprep.subr.bf16.mxu0 0
    %303 = vmatpush1.bf16.msra.mxu0 0
    %304 = vmatprep.subr.bf16.mxu0 0
    %305 = vmatpush1.bf16.msra.mxu0 0
    %306 = vmatprep.subr.bf16.mxu0 0
    %307 = vmatpush1.bf16.msra.mxu0 0
    %308 = vmatprep.mubr.bf16.mxu0 0
    %309 = vmatmul.mubr.bf16.gmra.mrb[0].mxu0 %v265
    %v310 = vpop.f32.mrb[0].mxu0
    %v311 = vadd.f32 %v238, %v310
    %v312 = vpop.f32.mrb[0].mxu0
    %v313 = vpop.f32.mrb[0].mxu0
    %v314 = vadd.f32 %v238, %v313
    %v315 = vpop.f32.mrb[0].mxu0
    %316 = vmatprep.mubr.bf16.mxu0 0
    %317 = vmatmul.mubr.bf16.gmra.mrb[0].mxu0 %v268
    %v318 = vpop.f32.mrb[0].mxu0
    %v319 = vadd.f32 %v238, %v318
    %v320 = vpop.f32.mrb[0].mxu0
    %v321 = vpop.f32.mrb[0].mxu0
    %v322 = vadd.f32 %v238, %v321
    %v323 = vpop.f32.mrb[0].mxu0
    %324 = vmatprep.mubr.bf16.mxu0 0
    %325 = vmatmul.mubr.bf16.gmra.mrb[0].mxu0 %v271
    %v326 = vpop.f32.mrb[0].mxu0
    %v327 = vadd.f32 %v238, %v326
    %v328 = vpop.f32.mrb[0].mxu0
    %v329 = vpop.f32.mrb[0].mxu0
    %v330 = vadd.f32 %v238, %v329
    %v331 = vpop.f32.mrb[0].mxu0
    %332 = vmatprep.mubr.bf16.mxu0 0
    %333 = vmatmul.mubr.bf16.gmra.mrb[0].mxu0 %v274
    %v334 = vpop.f32.mrb[0].mxu0
    %v335 = vadd.f32 %v238, %v334
    %v336 = vpop.f32.mrb[0].mxu0
    %v337 = vpop.f32.mrb[0].mxu0
    %v338 = vadd.f32 %v238, %v337
    %v339 = vpop.f32.mrb[0].mxu0
    %340 = vdwg.mxu0
    %vm341 = vcmp.gt.f32.partialorder %v311, 0.0
    %vm342 = vcmp.gt.f32.partialorder %v314, 0.0
    %vm343 = vcmp.gt.f32.partialorder %v319, 0.0
    %vm344 = vcmp.gt.f32.partialorder %v322, 0.0
    %vm345 = vcmp.gt.f32.partialorder %v327, 0.0
    %vm346 = vcmp.gt.f32.partialorder %v330, 0.0
    %vm347 = vcmp.gt.f32.partialorder %v335, 0.0
    %vm348 = vcmp.gt.f32.partialorder %v338, 0.0
    %v349 = vld [vmem:[%s4] sm:$0x1]
    %v351 = vlaneseq
    %v352 = vshrl.u32 %v351, 7
    %v353 = vsub.s32 0, %v352
    %v354 = vrot.slane %v349, %v353
    %v356 = vmul.f32 %v354, %v311
    %v357 = vmul.f32 %v354, %v314
    %v358 = vmul.f32 %v354, %v319
    %v359 = vmul.f32 %v354, %v322
    %v360 = vmul.f32 %v354, %v327
    %v361 = vmul.f32 %v354, %v330
    %v362 = vmul.f32 %v354, %v335
    %v363 = vmul.f32 %v354, %v338
    %v364 = vld [vmem:[%s5] sm:$0x1]
    %v366 = vlaneseq
    %v367 = vshrl.u32 %v366, 7
    %v368 = vsub.s32 0, %v367
    %v369 = vrot.slane %v364, %v368
    %v371 = vmul.f32 %v369, %v311
    %v372 = vmul.f32 %v369, %v314
    %v373 = vmul.f32 %v369, %v319
    %v374 = vmul.f32 %v369, %v322
    %v375 = vmul.f32 %v369, %v327
    %v376 = vmul.f32 %v369, %v330
    %v377 = vmul.f32 %v369, %v335
    %v378 = vmul.f32 %v369, %v338
    %v379 = vsel %vm341, %v356, %v371
    %v380 = vsel %vm342, %v357, %v372
    %v381 = vsel %vm343, %v358, %v373
    %v382 = vsel %vm344, %v359, %v374
    %v383 = vsel %vm345, %v360, %v375
    %v384 = vsel %vm346, %v361, %v376
    %v385 = vsel %vm347, %v362, %v377
    %v386 = vsel %vm348, %v363, %v378
    %v387 = vld [vmem:[%s6] sm:$0x1]
    %v389 = vlaneseq
    %v390 = vshrl.u32 %v389, 7
    %v391 = vsub.s32 0, %v390
    %v392 = vrot.slane %v387, %v391
    %v394 = vadd.f32 %v379, %v392
    %v395 = vadd.f32 %v380, %v392
    %v396 = vadd.f32 %v381, %v392
    %v397 = vadd.f32 %v382, %v392
    %v398 = vadd.f32 %v383, %v392
    %v399 = vadd.f32 %v384, %v392
    %v400 = vadd.f32 %v385, %v392
    %v401 = vadd.f32 %v386, %v392
    %v402 = vsel %vm191, %v394, 0.0
    %v403 = vsel %vm191, %v395, 0.0
    %v404 = vadd.f32 %v402, %v403
    %v405 = vsel %vm191, %v396, 0.0
    %v406 = vadd.f32 %v404, %v405
    %v407 = vsel %vm191, %v397, 0.0
    %v408 = vadd.f32 %v406, %v407
    %v409 = vsel %vm191, %v398, 0.0
    %v410 = vadd.f32 %v408, %v409
    %v411 = vsel %vm191, %v399, 0.0
    %v412 = vadd.f32 %v410, %v411
    %v413 = vsel %vm191, %v400, 0.0
    %v414 = vadd.f32 %v412, %v413
    %v415 = vsel %vm191, %v401, 0.0
    %v416 = vadd.f32 %v414, %v415
    %v417 = vrot.slane %v416, 4
    %v418 = vadd.f32 %v416, %v417
    %v419 = vrot.slane %v418, 2
    %v420 = vadd.f32 %v418, %v419
    %v421 = vrot.slane %v420, 1
    %v422 = vadd.f32 %v420, %v421
    %v423 = vrcp.pop 64.0
    %v424 = vmul.f32 %v422, %v423
    %vm425 = vcmask 253952
    %426 = vst.msk [vmem:[#allocation3] sm:$0x1] %vm425, %v424
    %v427 = vpack.c.bf16 %v395, %v394
    %v428 = vpack.c.bf16 %v397, %v396
    %v429 = vpack.c.bf16 %v399, %v398
    %v430 = vpack.c.bf16 %v401, %v400
    %431 = vmatprep.subr.bf16.mxu0 0
    %432 = vmatpush1.bf16.msra.mxu0 %v427
    %433 = vmatprep.subr.bf16.mxu0 0
    %434 = vmatpush1.bf16.msra.mxu0 %v428
    %435 = vmatprep.subr.bf16.mxu0 0
    %436 = vmatpush1.bf16.msra.mxu0 %v429
    %437 = vmatprep.subr.bf16.mxu0 0
    %438 = vmatpush1.bf16.msra.mxu0 %v430
    %439 = vmatprep.subr.bf16.mxu0 0
    %440 = vmatpush1.bf16.msra.mxu0 0
    %441 = vmatprep.subr.bf16.mxu0 0
    %442 = vmatpush1.bf16.msra.mxu0 0
    %443 = vmatprep.subr.bf16.mxu0 0
    %444 = vmatpush1.bf16.msra.mxu0 0
    %445 = vmatprep.subr.bf16.mxu0 0
    %446 = vmatpush1.bf16.msra.mxu0 0
    %447 = vmatprep.subr.bf16.mxu0 0
    %448 = vmatpush1.bf16.msra.mxu0 0
    %449 = vmatprep.subr.bf16.mxu0 0
    %450 = vmatpush1.bf16.msra.mxu0 0
    %451 = vmatprep.subr.bf16.mxu0 0
    %452 = vmatpush1.bf16.msra.mxu0 0
    %453 = vmatprep.subr.bf16.mxu0 0
    %454 = vmatpush1.bf16.msra.mxu0 0
    %455 = vmatprep.subr.bf16.mxu0 0
    %456 = vmatpush1.bf16.msra.mxu0 0
    %457 = vmatprep.subr.bf16.mxu0 0
    %458 = vmatpush1.bf16.msra.mxu0 0
    %459 = vmatprep.subr.bf16.mxu0 0
    %460 = vmatpush1.bf16.msra.mxu0 0
    %461 = vmatprep.subr.bf16.mxu0 0
    %462 = vmatpush1.bf16.msra.mxu0 0
    %463 = vmatprep.mubr.bf16.mxu0 0
    %464 = vmatmul.mubr.bf16.gmra.mrb[0].mxu0 %v115
    %v465 = vpop.f32.mrb[0].mxu0
    %v466 = vadd.f32 0.0, %v465
    %v467 = vpop.f32.mrb[0].mxu0
    %v468 = vpop.f32.mrb[0].mxu0
    %v469 = vadd.f32 0.0, %v468
    %v470 = vpop.f32.mrb[0].mxu0
    %471 = vmatprep.mubr.bf16.mxu0 0
    %472 = vmatmul.mubr.bf16.gmra.mrb[0].mxu0 %v118
    %v473 = vpop.f32.mrb[0].mxu0
    %v474 = vadd.f32 0.0, %v473
    %v475 = vpop.f32.mrb[0].mxu0
    %v476 = vpop.f32.mrb[0].mxu0
    %v477 = vadd.f32 0.0, %v476
    %v478 = vpop.f32.mrb[0].mxu0
    %479 = vmatprep.mubr.bf16.mxu0 0
    %480 = vmatmul.mubr.bf16.gmra.mrb[0].mxu0 %v121
    %v481 = vpop.f32.mrb[0].mxu0
    %v482 = vadd.f32 0.0, %v481
    %v483 = vpop.f32.mrb[0].mxu0
    %v484 = vpop.f32.mrb[0].mxu0
    %v485 = vadd.f32 0.0, %v484
    %v486 = vpop.f32.mrb[0].mxu0
    %487 = vmatprep.mubr.bf16.mxu0 0
    %488 = vmatmul.mubr.bf16.gmra.mrb[0].mxu0 %v124
    %v489 = vpop.f32.mrb[0].mxu0
    %v490 = vadd.f32 0.0, %v489
    %v491 = vpop.f32.mrb[0].mxu0
    %v492 = vpop.f32.mrb[0].mxu0
    %v493 = vadd.f32 0.0, %v492
    %v494 = vpop.f32.mrb[0].mxu0
    %495 = vdwg.mxu0
    %496 = vst.msk [vmem:[#allocation2] sm:$0xff] %vm191, %v427
    %497 = vst.msk [vmem:[#allocation2 + $0x8] sm:$0xff] %vm191, %v428
    %498 = vst.msk [vmem:[#allocation2 + $0x10] sm:$0xff] %vm191, %v429
    %499 = vst.msk [vmem:[#allocation2 + $0x18] sm:$0xff] %vm191, %v430
    %v500 = vpack.c.bf16 %v469, %v466
    %v501 = vpack.c.bf16 %v477, %v474
    %v502 = vpack.c.bf16 %v485, %v482
    %v503 = vpack.c.bf16 %v493, %v490
    %508 = vrot.lane.b32.xlu0 %v500, 32
    %v509 = vpop.permute.xlu0 %508
    %510 = vrot.lane.b32.xlu0 %v501, 32
    %v511 = vpop.permute.xlu0 %510
    %512 = vrot.lane.b32.xlu0 %v502, 32
    %v513 = vpop.permute.xlu0 %512
    %514 = vrot.lane.b32.xlu0 %v503, 32
    %v515 = vpop.permute.xlu0 %514
    %520 = vst.msk [vmem:[#allocation2] sm:$0xff] %vm216, %v509
    %521 = vst.msk [vmem:[#allocation2 + $0x8] sm:$0xff] %vm216, %v511
    %522 = vst.msk [vmem:[#allocation2 + $0x10] sm:$0xff] %vm216, %v513
    %523 = vst.msk [vmem:[#allocation2 + $0x18] sm:$0xff] %vm216, %v515
    %v524 = vld [vmem:[#allocation2] sm:$0xff]
    %v525 = vld [vmem:[#allocation2 + $0x8] sm:$0xff]
    %v526 = vld [vmem:[#allocation2 + $0x10] sm:$0xff]
    %v527 = vld [vmem:[#allocation2 + $0x18] sm:$0xff]
    %v528 = vld [vmem:[%s7] sm:$0xf]
    %v529 = vld [vmem:[%s7 + $0x4] sm:$0xf]
    %v530 = vld [vmem:[%s7 + $0x8] sm:$0xf]
    %v531 = vld [vmem:[%s7 + $0xc] sm:$0xf]
    %v532 = vld [vmem:[%s7 + $0x10] sm:$0xf]
    %v533 = vld [vmem:[%s7 + $0x14] sm:$0xf]
    %v534 = vld [vmem:[%s7 + $0x18] sm:$0xf]
    %v535 = vld [vmem:[%s7 + $0x1c] sm:$0xf]
    %v536 = vld [vmem:[%s8] sm:$0x1]
    %v538 = vlaneseq
    %v539 = vshrl.u32 %v538, 7
    %v540 = vsub.s32 0, %v539
    %v541 = vrot.slane %v536, %v540
    %v551 = vunpack.c.l.b16 %v528
    %v552 = vunpack.c.l.b16 %v529
    %v553 = vunpack.c.l.b16 %v530
    %v554 = vunpack.c.l.b16 %v531
    %v555 = vunpack.c.l.b16 %v532
    %v556 = vunpack.c.l.b16 %v533
    %v557 = vunpack.c.l.b16 %v534
    %v558 = vunpack.c.l.b16 %v535
    %v559 = vpack.c.b16 %v552, %v551
    %v560 = vpack.c.b16 %v554, %v553
    %v561 = vpack.c.b16 %v556, %v555
    %v562 = vpack.c.b16 %v558, %v557
    %v568 = vsel %vm113, %v524, 0
    %v571 = vsel %vm113, %v525, 0
    %v574 = vsel %vm113, %v526, 0
    %v577 = vsel %vm113, %v527, 0
    %579 = vmatprep.subr.bf16.mxu0 0
    %580 = vmatpush1.bf16.msra.mxu0 %v559
    %581 = vmatprep.subr.bf16.mxu0 0
    %582 = vmatpush1.bf16.msra.mxu0 %v560
    %583 = vmatprep.subr.bf16.mxu0 0
    %584 = vmatpush1.bf16.msra.mxu0 %v561
    %585 = vmatprep.subr.bf16.mxu0 0
    %586 = vmatpush1.bf16.msra.mxu0 %v562
    %587 = vmatprep.subr.bf16.mxu0 0
    %588 = vmatpush1.bf16.msra.mxu0 0
    %589 = vmatprep.subr.bf16.mxu0 0
    %590 = vmatpush1.bf16.msra.mxu0 0
    %591 = vmatprep.subr.bf16.mxu0 0
    %592 = vmatpush1.bf16.msra.mxu0 0
    %593 = vmatprep.subr.bf16.mxu0 0
    %594 = vmatpush1.bf16.msra.mxu0 0
    %595 = vmatprep.subr.bf16.mxu0 0
    %596 = vmatpush1.bf16.msra.mxu0 0
    %597 = vmatprep.subr.bf16.mxu0 0
    %598 = vmatpush1.bf16.msra.mxu0 0
    %599 = vmatprep.subr.bf16.mxu0 0
    %600 = vmatpush1.bf16.msra.mxu0 0
    %601 = vmatprep.subr.bf16.mxu0 0
    %602 = vmatpush1.bf16.msra.mxu0 0
    %603 = vmatprep.subr.bf16.mxu0 0
    %604 = vmatpush1.bf16.msra.mxu0 0
    %605 = vmatprep.subr.bf16.mxu0 0
    %606 = vmatpush1.bf16.msra.mxu0 0
    %607 = vmatprep.subr.bf16.mxu0 0
    %608 = vmatpush1.bf16.msra.mxu0 0
    %609 = vmatprep.subr.bf16.mxu0 0
    %610 = vmatpush1.bf16.msra.mxu0 0
    %611 = vmatprep.mubr.bf16.mxu0 0
    %612 = vmatmul.mubr.bf16.gmra.mrb[0].mxu0 %v568
    %v613 = vpop.f32.mrb[0].mxu0
    %v614 = vadd.f32 %v541, %v613
    %v615 = vpop.f32.mrb[0].mxu0
    %v616 = vpop.f32.mrb[0].mxu0
    %v617 = vadd.f32 %v541, %v616
    %v618 = vpop.f32.mrb[0].mxu0
    %619 = vmatprep.mubr.bf16.mxu0 0
    %620 = vmatmul.mubr.bf16.gmra.mrb[0].mxu0 %v571
    %v621 = vpop.f32.mrb[0].mxu0
    %v622 = vadd.f32 %v541, %v621
    %v623 = vpop.f32.mrb[0].mxu0
    %v624 = vpop.f32.mrb[0].mxu0
    %v625 = vadd.f32 %v541, %v624
    %v626 = vpop.f32.mrb[0].mxu0
    %627 = vmatprep.mubr.bf16.mxu0 0
    %628 = vmatmul.mubr.bf16.gmra.mrb[0].mxu0 %v574
    %v629 = vpop.f32.mrb[0].mxu0
    %v630 = vadd.f32 %v541, %v629
    %v631 = vpop.f32.mrb[0].mxu0
    %v632 = vpop.f32.mrb[0].mxu0
    %v633 = vadd.f32 %v541, %v632
    %v634 = vpop.f32.mrb[0].mxu0
    %635 = vmatprep.mubr.bf16.mxu0 0
    %636 = vmatmul.mubr.bf16.gmra.mrb[0].mxu0 %v577
    %v637 = vpop.f32.mrb[0].mxu0
    %v638 = vadd.f32 %v541, %v637
    %v639 = vpop.f32.mrb[0].mxu0
    %v640 = vpop.f32.mrb[0].mxu0
    %v641 = vadd.f32 %v541, %v640
    %v642 = vpop.f32.mrb[0].mxu0
    %643 = vdwg.mxu0
    %vm644 = vcmp.gt.f32.partialorder %v614, 0.0
    %vm645 = vcmp.gt.f32.partialorder %v617, 0.0
    %vm646 = vcmp.gt.f32.partialorder %v622, 0.0
    %vm647 = vcmp.gt.f32.partialorder %v625, 0.0
    %vm648 = vcmp.gt.f32.partialorder %v630, 0.0
    %vm649 = vcmp.gt.f32.partialorder %v633, 0.0
    %vm650 = vcmp.gt.f32.partialorder %v638, 0.0
    %vm651 = vcmp.gt.f32.partialorder %v641, 0.0
    %v652 = vld [vmem:[%s9] sm:$0x1]
    %v654 = vlaneseq
    %v655 = vshrl.u32 %v654, 7
    %v656 = vsub.s32 0, %v655
    %v657 = vrot.slane %v652, %v656
    %v659 = vmul.f32 %v657, %v614
    %v660 = vmul.f32 %v657, %v617
    %v661 = vmul.f32 %v657, %v622
    %v662 = vmul.f32 %v657, %v625
    %v663 = vmul.f32 %v657, %v630
    %v664 = vmul.f32 %v657, %v633
    %v665 = vmul.f32 %v657, %v638
    %v666 = vmul.f32 %v657, %v641
    %v667 = vld [vmem:[%s10] sm:$0x1]
    %v669 = vlaneseq
    %v670 = vshrl.u32 %v669, 7
    %v671 = vsub.s32 0, %v670
    %v672 = vrot.slane %v667, %v671
    %v674 = vmul.f32 %v672, %v614
    %v675 = vmul.f32 %v672, %v617
    %v676 = vmul.f32 %v672, %v622
    %v677 = vmul.f32 %v672, %v625
    %v678 = vmul.f32 %v672, %v630
    %v679 = vmul.f32 %v672, %v633
    %v680 = vmul.f32 %v672, %v638
    %v681 = vmul.f32 %v672, %v641
    %v682 = vsel %vm644, %v659, %v674
    %v683 = vsel %vm645, %v660, %v675
    %v684 = vsel %vm646, %v661, %v676
    %v685 = vsel %vm647, %v662, %v677
    %v686 = vsel %vm648, %v663, %v678
    %v687 = vsel %vm649, %v664, %v679
    %v688 = vsel %vm650, %v665, %v680
    %v689 = vsel %vm651, %v666, %v681
    %v690 = vld [vmem:[%s11] sm:$0x1]
    %v692 = vlaneseq
    %v693 = vshrl.u32 %v692, 7
    %v694 = vsub.s32 0, %v693
    %v695 = vrot.slane %v690, %v694
    %v697 = vadd.f32 %v682, %v695
    %v698 = vadd.f32 %v683, %v695
    %v699 = vadd.f32 %v684, %v695
    %v700 = vadd.f32 %v685, %v695
    %v701 = vadd.f32 %v686, %v695
    %v702 = vadd.f32 %v687, %v695
    %v703 = vadd.f32 %v688, %v695
    %v704 = vadd.f32 %v689, %v695
    %v705 = vsel %vm191, %v697, 0.0
    %v706 = vsel %vm191, %v698, 0.0
    %v707 = vadd.f32 %v705, %v706
    %v708 = vsel %vm191, %v699, 0.0
    %v709 = vadd.f32 %v707, %v708
    %v710 = vsel %vm191, %v700, 0.0
    %v711 = vadd.f32 %v709, %v710
    %v712 = vsel %vm191, %v701, 0.0
    %v713 = vadd.f32 %v711, %v712
    %v714 = vsel %vm191, %v702, 0.0
    %v715 = vadd.f32 %v713, %v714
    %v716 = vsel %vm191, %v703, 0.0
    %v717 = vadd.f32 %v715, %v716
    %v718 = vsel %vm191, %v704, 0.0
    %v719 = vadd.f32 %v717, %v718
    %v720 = vrot.slane %v719, 4
    %v721 = vadd.f32 %v719, %v720
    %v722 = vrot.slane %v721, 2
    %v723 = vadd.f32 %v721, %v722
    %v724 = vrot.slane %v723, 1
    %v725 = vadd.f32 %v723, %v724
    %v726 = vmul.f32 %v725, %v423
    %728 = vrot.lane.b32.xlu0 %v726, 32
    %v729 = vpop.permute.xlu0 %728
    %vm731 = vcmask 516352
    %732 = vst.msk [vmem:[#allocation3] sm:$0x1] %vm731, %v729
    %v733 = vpack.c.bf16 %v698, %v697
    %v734 = vpack.c.bf16 %v700, %v699
    %v735 = vpack.c.bf16 %v702, %v701
    %v736 = vpack.c.bf16 %v704, %v703
    %737 = vmatprep.subr.bf16.mxu0 0
    %738 = vmatpush1.bf16.msra.mxu0 %v733
    %739 = vmatprep.subr.bf16.mxu0 0
    %740 = vmatpush1.bf16.msra.mxu0 %v734
    %741 = vmatprep.subr.bf16.mxu0 0
    %742 = vmatpush1.bf16.msra.mxu0 %v735
    %743 = vmatprep.subr.bf16.mxu0 0
    %744 = vmatpush1.bf16.msra.mxu0 %v736
    %745 = vmatprep.subr.bf16.mxu0 0
    %746 = vmatpush1.bf16.msra.mxu0 0
    %747 = vmatprep.subr.bf16.mxu0 0
    %748 = vmatpush1.bf16.msra.mxu0 0
    %749 = vmatprep.subr.bf16.mxu0 0
    %750 = vmatpush1.bf16.msra.mxu0 0
    %751 = vmatprep.subr.bf16.mxu0 0
    %752 = vmatpush1.bf16.msra.mxu0 0
    %753 = vmatprep.subr.bf16.mxu0 0
    %754 = vmatpush1.bf16.msra.mxu0 0
    %755 = vmatprep.subr.bf16.mxu0 0
    %756 = vmatpush1.bf16.msra.mxu0 0
    %757 = vmatprep.subr.bf16.mxu0 0
    %758 = vmatpush1.bf16.msra.mxu0 0
    %759 = vmatprep.subr.bf16.mxu0 0
    %760 = vmatpush1.bf16.msra.mxu0 0
    %761 = vmatprep.subr.bf16.mxu0 0
    %762 = vmatpush1.bf16.msra.mxu0 0
    %763 = vmatprep.subr.bf16.mxu0 0
    %764 = vmatpush1.bf16.msra.mxu0 0
    %765 = vmatprep.subr.bf16.mxu0 0
    %766 = vmatpush1.bf16.msra.mxu0 0
    %767 = vmatprep.subr.bf16.mxu0 0
    %768 = vmatpush1.bf16.msra.mxu0 0
    %769 = vmatprep.mubr.bf16.mxu0 0
    %770 = vmatmul.mubr.bf16.gmra.mrb[0].mxu0 %v115
    %v771 = vpop.f32.mrb[0].mxu0
    %v772 = vadd.f32 0.0, %v771
    %v773 = vpop.f32.mrb[0].mxu0
    %v774 = vpop.f32.mrb[0].mxu0
    %v775 = vadd.f32 0.0, %v774
    %v776 = vpop.f32.mrb[0].mxu0
    %777 = vmatprep.mubr.bf16.mxu0 0
    %778 = vmatmul.mubr.bf16.gmra.mrb[0].mxu0 %v118
    %v779 = vpop.f32.mrb[0].mxu0
    %v780 = vadd.f32 0.0, %v779
    %v781 = vpop.f32.mrb[0].mxu0
    %v782 = vpop.f32.mrb[0].mxu0
    %v783 = vadd.f32 0.0, %v782
    %v784 = vpop.f32.mrb[0].mxu0
    %785 = vmatprep.mubr.bf16.mxu0 0
    %786 = vmatmul.mubr.bf16.gmra.mrb[0].mxu0 %v121
    %v787 = vpop.f32.mrb[0].mxu0
    %v788 = vadd.f32 0.0, %v787
    %v789 = vpop.f32.mrb[0].mxu0
    %v790 = vpop.f32.mrb[0].mxu0
    %v791 = vadd.f32 0.0, %v790
    %v792 = vpop.f32.mrb[0].mxu0
    %793 = vmatprep.mubr.bf16.mxu0 0
    %794 = vmatmul.mubr.bf16.gmra.mrb[0].mxu0 %v124
    %v795 = vpop.f32.mrb[0].mxu0
    %v796 = vadd.f32 0.0, %v795
    %v797 = vpop.f32.mrb[0].mxu0
    %v798 = vpop.f32.mrb[0].mxu0
    %v799 = vadd.f32 0.0, %v798
    %v800 = vpop.f32.mrb[0].mxu0
    %801 = vdwg.mxu0
    %802 = vst.msk [vmem:[#allocation2] sm:$0xff] %vm191, %v733
    %803 = vst.msk [vmem:[#allocation2 + $0x8] sm:$0xff] %vm191, %v734
    %804 = vst.msk [vmem:[#allocation2 + $0x10] sm:$0xff] %vm191, %v735
    %805 = vst.msk [vmem:[#allocation2 + $0x18] sm:$0xff] %vm191, %v736
    %v806 = vpack.c.bf16 %v775, %v772
    %v807 = vpack.c.bf16 %v783, %v780
    %v808 = vpack.c.bf16 %v791, %v788
    %v809 = vpack.c.bf16 %v799, %v796
    %814 = vrot.lane.b32.xlu0 %v806, 32
    %v815 = vpop.permute.xlu0 %814
    %816 = vrot.lane.b32.xlu0 %v807, 32
    %v817 = vpop.permute.xlu0 %816
    %818 = vrot.lane.b32.xlu0 %v808, 32
    %v819 = vpop.permute.xlu0 %818
    %820 = vrot.lane.b32.xlu0 %v809, 32
    %v821 = vpop.permute.xlu0 %820
    %826 = vst.msk [vmem:[#allocation2] sm:$0xff] %vm216, %v815
    %827 = vst.msk [vmem:[#allocation2 + $0x8] sm:$0xff] %vm216, %v817
    %828 = vst.msk [vmem:[#allocation2 + $0x10] sm:$0xff] %vm216, %v819
    %829 = vst.msk [vmem:[#allocation2 + $0x18] sm:$0xff] %vm216, %v821
    %v830 = vld [vmem:[#allocation2] sm:$0xff]
    %v831 = vld [vmem:[#allocation2 + $0x8] sm:$0xff]
    %v832 = vld [vmem:[#allocation2 + $0x10] sm:$0xff]
    %v833 = vld [vmem:[#allocation2 + $0x18] sm:$0xff]
    %v834 = vld [vmem:[%s12] sm:$0xf]
    %v835 = vld [vmem:[%s12 + $0x4] sm:$0xf]
    %v836 = vld [vmem:[%s12 + $0x8] sm:$0xf]
    %v837 = vld [vmem:[%s12 + $0xc] sm:$0xf]
    %v838 = vld [vmem:[%s12 + $0x10] sm:$0xf]
    %v839 = vld [vmem:[%s12 + $0x14] sm:$0xf]
    %v840 = vld [vmem:[%s12 + $0x18] sm:$0xf]
    %v841 = vld [vmem:[%s12 + $0x1c] sm:$0xf]
    %v842 = vld [vmem:[%s13] sm:$0x1]
    %v844 = vlaneseq
    %v845 = vshrl.u32 %v844, 7
    %v846 = vsub.s32 0, %v845
    %v847 = vrot.slane %v842, %v846
    %v857 = vunpack.c.l.b16 %v834
    %v858 = vunpack.c.l.b16 %v835
    %v859 = vunpack.c.l.b16 %v836
    %v860 = vunpack.c.l.b16 %v837
    %v861 = vunpack.c.l.b16 %v838
    %v862 = vunpack.c.l.b16 %v839
    %v863 = vunpack.c.l.b16 %v840
    %v864 = vunpack.c.l.b16 %v841
    %v865 = vpack.c.b16 %v858, %v857
    %v866 = vpack.c.b16 %v860, %v859
    %v867 = vpack.c.b16 %v862, %v861
    %v868 = vpack.c.b16 %v864, %v863
    %v874 = vsel %vm113, %v830, 0
    %v877 = vsel %vm113, %v831, 0
    %v880 = vsel %vm113, %v832, 0
    %v883 = vsel %vm113, %v833, 0
    %885 = vmatprep.subr.bf16.mxu0 0
    %886 = vmatpush1.bf16.msra.mxu0 %v865
    %887 = vmatprep.subr.bf16.mxu0 0
    %888 = vmatpush1.bf16.msra.mxu0 %v866
    %889 = vmatprep.subr.bf16.mxu0 0
    %890 = vmatpush1.bf16.msra.mxu0 %v867
    %891 = vmatprep.subr.bf16.mxu0 0
    %892 = vmatpush1.bf16.msra.mxu0 %v868
    %893 = vmatprep.subr.bf16.mxu0 0
    %894 = vmatpush1.bf16.msra.mxu0 0
    %895 = vmatprep.subr.bf16.mxu0 0
    %896 = vmatpush1.bf16.msra.mxu0 0
    %897 = vmatprep.subr.bf16.mxu0 0
    %898 = vmatpush1.bf16.msra.mxu0 0
    %899 = vmatprep.subr.bf16.mxu0 0
    %900 = vmatpush1.bf16.msra.mxu0 0
    %901 = vmatprep.subr.bf16.mxu0 0
    %902 = vmatpush1.bf16.msra.mxu0 0
    %903 = vmatprep.subr.bf16.mxu0 0
    %904 = vmatpush1.bf16.msra.mxu0 0
    %905 = vmatprep.subr.bf16.mxu0 0
    %906 = vmatpush1.bf16.msra.mxu0 0
    %907 = vmatprep.subr.bf16.mxu0 0
    %908 = vmatpush1.bf16.msra.mxu0 0
    %909 = vmatprep.subr.bf16.mxu0 0
    %910 = vmatpush1.bf16.msra.mxu0 0
    %911 = vmatprep.subr.bf16.mxu0 0
    %912 = vmatpush1.bf16.msra.mxu0 0
    %913 = vmatprep.subr.bf16.mxu0 0
    %914 = vmatpush1.bf16.msra.mxu0 0
    %915 = vmatprep.subr.bf16.mxu0 0
    %916 = vmatpush1.bf16.msra.mxu0 0
    %917 = vmatprep.mubr.bf16.mxu0 0
    %918 = vmatmul.mubr.bf16.gmra.mrb[0].mxu0 %v874
    %v919 = vpop.f32.mrb[0].mxu0
    %v920 = vadd.f32 %v847, %v919
    %v921 = vpop.f32.mrb[0].mxu0
    %v922 = vpop.f32.mrb[0].mxu0
    %v923 = vadd.f32 %v847, %v922
    %v924 = vpop.f32.mrb[0].mxu0
    %925 = vmatprep.mubr.bf16.mxu0 0
    %926 = vmatmul.mubr.bf16.gmra.mrb[0].mxu0 %v877
    %v927 = vpop.f32.mrb[0].mxu0
    %v928 = vadd.f32 %v847, %v927
    %v929 = vpop.f32.mrb[0].mxu0
    %v930 = vpop.f32.mrb[0].mxu0
    %v931 = vadd.f32 %v847, %v930
    %v932 = vpop.f32.mrb[0].mxu0
    %933 = vmatprep.mubr.bf16.mxu0 0
    %934 = vmatmul.mubr.bf16.gmra.mrb[0].mxu0 %v880
    %v935 = vpop.f32.mrb[0].mxu0
    %v936 = vadd.f32 %v847, %v935
    %v937 = vpop.f32.mrb[0].mxu0
    %v938 = vpop.f32.mrb[0].mxu0
    %v939 = vadd.f32 %v847, %v938
    %v940 = vpop.f32.mrb[0].mxu0
    %941 = vmatprep.mubr.bf16.mxu0 0
    %942 = vmatmul.mubr.bf16.gmra.mrb[0].mxu0 %v883
    %v943 = vpop.f32.mrb[0].mxu0
    %v944 = vadd.f32 %v847, %v943
    %v945 = vpop.f32.mrb[0].mxu0
    %v946 = vpop.f32.mrb[0].mxu0
    %v947 = vadd.f32 %v847, %v946
    %v948 = vpop.f32.mrb[0].mxu0
    %949 = vdwg.mxu0
    %vm950 = vcmp.gt.f32.partialorder %v920, 0.0
    %vm951 = vcmp.gt.f32.partialorder %v923, 0.0
    %vm952 = vcmp.gt.f32.partialorder %v928, 0.0
    %vm953 = vcmp.gt.f32.partialorder %v931, 0.0
    %vm954 = vcmp.gt.f32.partialorder %v936, 0.0
    %vm955 = vcmp.gt.f32.partialorder %v939, 0.0
    %vm956 = vcmp.gt.f32.partialorder %v944, 0.0
    %vm957 = vcmp.gt.f32.partialorder %v947, 0.0
    %v958 = vld [vmem:[%s14] sm:$0x1]
    %v960 = vlaneseq
    %v961 = vshrl.u32 %v960, 7
    %v962 = vsub.s32 0, %v961
    %v963 = vrot.slane %v958, %v962
    %v965 = vmul.f32 %v963, %v920
    %v966 = vmul.f32 %v963, %v923
    %v967 = vmul.f32 %v963, %v928
    %v968 = vmul.f32 %v963, %v931
    %v969 = vmul.f32 %v963, %v936
    %v970 = vmul.f32 %v963, %v939
    %v971 = vmul.f32 %v963, %v944
    %v972 = vmul.f32 %v963, %v947
    %v973 = vld [vmem:[%s15] sm:$0x1]
    %v975 = vlaneseq
    %v976 = vshrl.u32 %v975, 7
    %v977 = vsub.s32 0, %v976
    %v978 = vrot.slane %v973, %v977
    %v980 = vmul.f32 %v978, %v920
    %v981 = vmul.f32 %v978, %v923
    %v982 = vmul.f32 %v978, %v928
    %v983 = vmul.f32 %v978, %v931
    %v984 = vmul.f32 %v978, %v936
    %v985 = vmul.f32 %v978, %v939
    %v986 = vmul.f32 %v978, %v944
    %v987 = vmul.f32 %v978, %v947
    %v988 = vsel %vm950, %v965, %v980
    %v989 = vsel %vm951, %v966, %v981
    %v990 = vsel %vm952, %v967, %v982
    %v991 = vsel %vm953, %v968, %v983
    %v992 = vsel %vm954, %v969, %v984
    %v993 = vsel %vm955, %v970, %v985
    %v994 = vsel %vm956, %v971, %v986
    %v995 = vsel %vm957, %v972, %v987
    %v996 = vld [vmem:[%s16] sm:$0x1]
    %v998 = vlaneseq
    %v999 = vshrl.u32 %v998, 7
    %v1000 = vsub.s32 0, %v999
    %v1001 = vrot.slane %v996, %v1000
    %v1003 = vadd.f32 %v988, %v1001
    %v1004 = vadd.f32 %v989, %v1001
    %v1005 = vadd.f32 %v990, %v1001
    %v1006 = vadd.f32 %v991, %v1001
    %v1007 = vadd.f32 %v992, %v1001
    %v1008 = vadd.f32 %v993, %v1001
    %v1009 = vadd.f32 %v994, %v1001
    %v1010 = vadd.f32 %v995, %v1001
    %v1011 = vsel %vm191, %v1003, 0.0
    %v1012 = vsel %vm191, %v1004, 0.0
    %v1013 = vadd.f32 %v1011, %v1012
    %v1014 = vsel %vm191, %v1005, 0.0
    %v1015 = vadd.f32 %v1013, %v1014
    %v1016 = vsel %vm191, %v1006, 0.0
    %v1017 = vadd.f32 %v1015, %v1016
    %v1018 = vsel %vm191, %v1007, 0.0
    %v1019 = vadd.f32 %v1017, %v1018
    %v1020 = vsel %vm191, %v1008, 0.0
    %v1021 = vadd.f32 %v1019, %v1020
    %v1022 = vsel %vm191, %v1009, 0.0
    %v1023 = vadd.f32 %v1021, %v1022
    %v1024 = vsel %vm191, %v1010, 0.0
    %v1025 = vadd.f32 %v1023, %v1024
    %v1026 = vrot.slane %v1025, 4
    %v1027 = vadd.f32 %v1025, %v1026
    %v1028 = vrot.slane %v1027, 2
    %v1029 = vadd.f32 %v1027, %v1028
    %v1030 = vrot.slane %v1029, 1
    %v1031 = vadd.f32 %v1029, %v1030
    %v1032 = vmul.f32 %v1031, %v423
    %1034 = vrot.lane.b32.xlu0 %v1032, 64
    %v1035 = vpop.permute.xlu0 %1034
    %vm1037 = vcmask 778752
    %1038 = vst.msk [vmem:[#allocation3] sm:$0x1] %vm1037, %v1035
    %v1039 = vpack.c.bf16 %v1004, %v1003
    %v1040 = vpack.c.bf16 %v1006, %v1005
    %v1041 = vpack.c.bf16 %v1008, %v1007
    %v1042 = vpack.c.bf16 %v1010, %v1009
    %1043 = vmatprep.subr.bf16.mxu0 0
    %1044 = vmatpush1.bf16.msra.mxu0 %v1039
    %1045 = vmatprep.subr.bf16.mxu0 0
    %1046 = vmatpush1.bf16.msra.mxu0 %v1040
    %1047 = vmatprep.subr.bf16.mxu0 0
    %1048 = vmatpush1.bf16.msra.mxu0 %v1041
    %1049 = vmatprep.subr.bf16.mxu0 0
    %1050 = vmatpush1.bf16.msra.mxu0 %v1042
    %1051 = vmatprep.subr.bf16.mxu0 0
    %1052 = vmatpush1.bf16.msra.mxu0 0
    %1053 = vmatprep.subr.bf16.mxu0 0
    %1054 = vmatpush1.bf16.msra.mxu0 0
    %1055 = vmatprep.subr.bf16.mxu0 0
    %1056 = vmatpush1.bf16.msra.mxu0 0
    %1057 = vmatprep.subr.bf16.mxu0 0
    %1058 = vmatpush1.bf16.msra.mxu0 0
    %1059 = vmatprep.subr.bf16.mxu0 0
    %1060 = vmatpush1.bf16.msra.mxu0 0
    %1061 = vmatprep.subr.bf16.mxu0 0
    %1062 = vmatpush1.bf16.msra.mxu0 0
    %1063 = vmatprep.subr.bf16.mxu0 0
    %1064 = vmatpush1.bf16.msra.mxu0 0
    %1065 = vmatprep.subr.bf16.mxu0 0
    %1066 = vmatpush1.bf16.msra.mxu0 0
    %1067 = vmatprep.subr.bf16.mxu0 0
    %1068 = vmatpush1.bf16.msra.mxu0 0
    %1069 = vmatprep.subr.bf16.mxu0 0
    %1070 = vmatpush1.bf16.msra.mxu0 0
    %1071 = vmatprep.subr.bf16.mxu0 0
    %1072 = vmatpush1.bf16.msra.mxu0 0
    %1073 = vmatprep.subr.bf16.mxu0 0
    %1074 = vmatpush1.bf16.msra.mxu0 0
    %1075 = vmatprep.mubr.bf16.mxu0 0
    %1076 = vmatmul.mubr.bf16.gmra.mrb[0].mxu0 %v115
    %v1077 = vpop.f32.mrb[0].mxu0
    %v1078 = vadd.f32 0.0, %v1077
    %v1079 = vpop.f32.mrb[0].mxu0
    %v1080 = vpop.f32.mrb[0].mxu0
    %v1081 = vadd.f32 0.0, %v1080
    %v1082 = vpop.f32.mrb[0].mxu0
    %1083 = vmatprep.mubr.bf16.mxu0 0
    %1084 = vmatmul.mubr.bf16.gmra.mrb[0].mxu0 %v118
    %v1085 = vpop.f32.mrb[0].mxu0
    %v1086 = vadd.f32 0.0, %v1085
    %v1087 = vpop.f32.mrb[0].mxu0
    %v1088 = vpop.f32.mrb[0].mxu0
    %v1089 = vadd.f32 0.0, %v1088
    %v1090 = vpop.f32.mrb[0].mxu0
    %1091 = vmatprep.mubr.bf16.mxu0 0
    %1092 = vmatmul.mubr.bf16.gmra.mrb[0].mxu0 %v121
    %v1093 = vpop.f32.mrb[0].mxu0
    %v1094 = vadd.f32 0.0, %v1093
    %v1095 = vpop.f32.mrb[0].mxu0
    %v1096 = vpop.f32.mrb[0].mxu0
    %v1097 = vadd.f32 0.0, %v1096
    %v1098 = vpop.f32.mrb[0].mxu0
    %1099 = vmatprep.mubr.bf16.mxu0 0
    %1100 = vmatmul.mubr.bf16.gmra.mrb[0].mxu0 %v124
    %v1101 = vpop.f32.mrb[0].mxu0
    %v1102 = vadd.f32 0.0, %v1101
    %v1103 = vpop.f32.mrb[0].mxu0
    %v1104 = vpop.f32.mrb[0].mxu0
    %v1105 = vadd.f32 0.0, %v1104
    %v1106 = vpop.f32.mrb[0].mxu0
    %1107 = vdwg.mxu0
    %1108 = vst.msk [vmem:[#allocation2] sm:$0xff] %vm191, %v1039
    %1109 = vst.msk [vmem:[#allocation2 + $0x8] sm:$0xff] %vm191, %v1040
    %1110 = vst.msk [vmem:[#allocation2 + $0x10] sm:$0xff] %vm191, %v1041
    %1111 = vst.msk [vmem:[#allocation2 + $0x18] sm:$0xff] %vm191, %v1042
    %v1112 = vpack.c.bf16 %v1081, %v1078
    %v1113 = vpack.c.bf16 %v1089, %v1086
    %v1114 = vpack.c.bf16 %v1097, %v1094
    %v1115 = vpack.c.bf16 %v1105, %v1102
    %1120 = vrot.lane.b32.xlu0 %v1112, 32
    %v1121 = vpop.permute.xlu0 %1120
    %1122 = vrot.lane.b32.xlu0 %v1113, 32
    %v1123 = vpop.permute.xlu0 %1122
    %1124 = vrot.lane.b32.xlu0 %v1114, 32
    %v1125 = vpop.permute.xlu0 %1124
    %1126 = vrot.lane.b32.xlu0 %v1115, 32
    %v1127 = vpop.permute.xlu0 %1126
    %1132 = vst.msk [vmem:[#allocation2] sm:$0xff] %vm216, %v1121
    %1133 = vst.msk [vmem:[#allocation2 + $0x8] sm:$0xff] %vm216, %v1123
    %1134 = vst.msk [vmem:[#allocation2 + $0x10] sm:$0xff] %vm216, %v1125
    %1135 = vst.msk [vmem:[#allocation2 + $0x18] sm:$0xff] %vm216, %v1127
    %v1136 = vld [vmem:[#allocation2] sm:$0xff]
    %v1137 = vld [vmem:[#allocation2 + $0x8] sm:$0xff]
    %v1138 = vld [vmem:[#allocation2 + $0x10] sm:$0xff]
    %v1139 = vld [vmem:[#allocation2 + $0x18] sm:$0xff]
    %v1140 = vld [vmem:[%s17] sm:$0xf]
    %v1141 = vld [vmem:[%s17 + $0x4] sm:$0xf]
    %v1142 = vld [vmem:[%s17 + $0x8] sm:$0xf]
    %v1143 = vld [vmem:[%s17 + $0xc] sm:$0xf]
    %v1144 = vld [vmem:[%s17 + $0x10] sm:$0xf]
    %v1145 = vld [vmem:[%s17 + $0x14] sm:$0xf]
    %v1146 = vld [vmem:[%s17 + $0x18] sm:$0xf]
    %v1147 = vld [vmem:[%s17 + $0x1c] sm:$0xf]
    %v1148 = vld [vmem:[%s18] sm:$0x1]
    %v1150 = vlaneseq
    %v1151 = vshrl.u32 %v1150, 7
    %v1152 = vsub.s32 0, %v1151
    %v1153 = vrot.slane %v1148, %v1152
    %v1163 = vunpack.c.l.b16 %v1140
    %v1164 = vunpack.c.l.b16 %v1141
    %v1165 = vunpack.c.l.b16 %v1142
    %v1166 = vunpack.c.l.b16 %v1143
    %v1167 = vunpack.c.l.b16 %v1144
    %v1168 = vunpack.c.l.b16 %v1145
    %v1169 = vunpack.c.l.b16 %v1146
    %v1170 = vunpack.c.l.b16 %v1147
    %v1171 = vpack.c.b16 %v1164, %v1163
    %v1172 = vpack.c.b16 %v1166, %v1165
    %v1173 = vpack.c.b16 %v1168, %v1167
    %v1174 = vpack.c.b16 %v1170, %v1169
    %v1180 = vsel %vm113, %v1136, 0
    %v1183 = vsel %vm113, %v1137, 0
    %v1186 = vsel %vm113, %v1138, 0
    %v1189 = vsel %vm113, %v1139, 0
    %1191 = vmatprep.subr.bf16.mxu0 0
    %1192 = vmatpush1.bf16.msra.mxu0 %v1171
    %1193 = vmatprep.subr.bf16.mxu0 0
    %1194 = vmatpush1.bf16.msra.mxu0 %v1172
    %1195 = vmatprep.subr.bf16.mxu0 0
    %1196 = vmatpush1.bf16.msra.mxu0 %v1173
    %1197 = vmatprep.subr.bf16.mxu0 0
    %1198 = vmatpush1.bf16.msra.mxu0 %v1174
    %1199 = vmatprep.subr.bf16.mxu0 0
    %1200 = vmatpush1.bf16.msra.mxu0 0
    %1201 = vmatprep.subr.bf16.mxu0 0
    %1202 = vmatpush1.bf16.msra.mxu0 0
    %1203 = vmatprep.subr.bf16.mxu0 0
    %1204 = vmatpush1.bf16.msra.mxu0 0
    %1205 = vmatprep.subr.bf16.mxu0 0
    %1206 = vmatpush1.bf16.msra.mxu0 0
    %1207 = vmatprep.subr.bf16.mxu0 0
    %1208 = vmatpush1.bf16.msra.mxu0 0
    %1209 = vmatprep.subr.bf16.mxu0 0
    %1210 = vmatpush1.bf16.msra.mxu0 0
    %1211 = vmatprep.subr.bf16.mxu0 0
    %1212 = vmatpush1.bf16.msra.mxu0 0
    %1213 = vmatprep.subr.bf16.mxu0 0
    %1214 = vmatpush1.bf16.msra.mxu0 0
    %1215 = vmatprep.subr.bf16.mxu0 0
    %1216 = vmatpush1.bf16.msra.mxu0 0
    %1217 = vmatprep.subr.bf16.mxu0 0
    %1218 = vmatpush1.bf16.msra.mxu0 0
    %1219 = vmatprep.subr.bf16.mxu0 0
    %1220 = vmatpush1.bf16.msra.mxu0 0
    %1221 = vmatprep.subr.bf16.mxu0 0
    %1222 = vmatpush1.bf16.msra.mxu0 0
    %1223 = vmatprep.mubr.bf16.mxu0 0
    %1224 = vmatmul.mubr.bf16.gmra.mrb[0].mxu0 %v1180
    %v1225 = vpop.f32.mrb[0].mxu0
    %v1226 = vadd.f32 %v1153, %v1225
    %v1227 = vpop.f32.mrb[0].mxu0
    %v1228 = vpop.f32.mrb[0].mxu0
    %v1229 = vadd.f32 %v1153, %v1228
    %v1230 = vpop.f32.mrb[0].mxu0
    %1231 = vmatprep.mubr.bf16.mxu0 0
    %1232 = vmatmul.mubr.bf16.gmra.mrb[0].mxu0 %v1183
    %v1233 = vpop.f32.mrb[0].mxu0
    %v1234 = vadd.f32 %v1153, %v1233
    %v1235 = vpop.f32.mrb[0].mxu0
    %v1236 = vpop.f32.mrb[0].mxu0
    %v1237 = vadd.f32 %v1153, %v1236
    %v1238 = vpop.f32.mrb[0].mxu0
    %1239 = vmatprep.mubr.bf16.mxu0 0
    %1240 = vmatmul.mubr.bf16.gmra.mrb[0].mxu0 %v1186
    %v1241 = vpop.f32.mrb[0].mxu0
    %v1242 = vadd.f32 %v1153, %v1241
    %v1243 = vpop.f32.mrb[0].mxu0
    %v1244 = vpop.f32.mrb[0].mxu0
    %v1245 = vadd.f32 %v1153, %v1244
    %v1246 = vpop.f32.mrb[0].mxu0
    %1247 = vmatprep.mubr.bf16.mxu0 0
    %1248 = vmatmul.mubr.bf16.gmra.mrb[0].mxu0 %v1189
    %v1249 = vpop.f32.mrb[0].mxu0
    %v1250 = vadd.f32 %v1153, %v1249
    %v1251 = vpop.f32.mrb[0].mxu0
    %v1252 = vpop.f32.mrb[0].mxu0
    %v1253 = vadd.f32 %v1153, %v1252
    %v1254 = vpop.f32.mrb[0].mxu0
    %1255 = vdwg.mxu0
    %vm1256 = vcmp.gt.f32.partialorder %v1226, 0.0
    %vm1257 = vcmp.gt.f32.partialorder %v1229, 0.0
    %vm1258 = vcmp.gt.f32.partialorder %v1234, 0.0
    %vm1259 = vcmp.gt.f32.partialorder %v1237, 0.0
    %vm1260 = vcmp.gt.f32.partialorder %v1242, 0.0
    %vm1261 = vcmp.gt.f32.partialorder %v1245, 0.0
    %vm1262 = vcmp.gt.f32.partialorder %v1250, 0.0
    %vm1263 = vcmp.gt.f32.partialorder %v1253, 0.0
    %v1264 = vld [vmem:[%s19] sm:$0x1]
    %v1266 = vlaneseq
    %v1267 = vshrl.u32 %v1266, 7
    %v1268 = vsub.s32 0, %v1267
    %v1269 = vrot.slane %v1264, %v1268
    %v1271 = vmul.f32 %v1269, %v1226
    %v1272 = vmul.f32 %v1269, %v1229
    %v1273 = vmul.f32 %v1269, %v1234
    %v1274 = vmul.f32 %v1269, %v1237
    %v1275 = vmul.f32 %v1269, %v1242
    %v1276 = vmul.f32 %v1269, %v1245
    %v1277 = vmul.f32 %v1269, %v1250
    %v1278 = vmul.f32 %v1269, %v1253
    %v1279 = vld [vmem:[%s20] sm:$0x1]
    %v1281 = vlaneseq
    %v1282 = vshrl.u32 %v1281, 7
    %v1283 = vsub.s32 0, %v1282
    %v1284 = vrot.slane %v1279, %v1283
    %v1286 = vmul.f32 %v1284, %v1226
    %v1287 = vmul.f32 %v1284, %v1229
    %v1288 = vmul.f32 %v1284, %v1234
    %v1289 = vmul.f32 %v1284, %v1237
    %v1290 = vmul.f32 %v1284, %v1242
    %v1291 = vmul.f32 %v1284, %v1245
    %v1292 = vmul.f32 %v1284, %v1250
    %v1293 = vmul.f32 %v1284, %v1253
    %v1294 = vsel %vm1256, %v1271, %v1286
    %v1295 = vsel %vm1257, %v1272, %v1287
    %v1296 = vsel %vm1258, %v1273, %v1288
    %v1297 = vsel %vm1259, %v1274, %v1289
    %v1298 = vsel %vm1260, %v1275, %v1290
    %v1299 = vsel %vm1261, %v1276, %v1291
    %v1300 = vsel %vm1262, %v1277, %v1292
    %v1301 = vsel %vm1263, %v1278, %v1293
    %v1302 = vld [vmem:[%s21] sm:$0x1]
    %v1304 = vlaneseq
    %v1305 = vshrl.u32 %v1304, 7
    %v1306 = vsub.s32 0, %v1305
    %v1307 = vrot.slane %v1302, %v1306
    %v1309 = vadd.f32 %v1294, %v1307
    %v1310 = vadd.f32 %v1295, %v1307
    %v1311 = vadd.f32 %v1296, %v1307
    %v1312 = vadd.f32 %v1297, %v1307
    %v1313 = vadd.f32 %v1298, %v1307
    %v1314 = vadd.f32 %v1299, %v1307
    %v1315 = vadd.f32 %v1300, %v1307
    %v1316 = vadd.f32 %v1301, %v1307
    %v1317 = vsel %vm191, %v1309, 0.0
    %v1318 = vsel %vm191, %v1310, 0.0
    %v1319 = vadd.f32 %v1317, %v1318
    %v1320 = vsel %vm191, %v1311, 0.0
    %v1321 = vadd.f32 %v1319, %v1320
    %v1322 = vsel %vm191, %v1312, 0.0
    %v1323 = vadd.f32 %v1321, %v1322
    %v1324 = vsel %vm191, %v1313, 0.0
    %v1325 = vadd.f32 %v1323, %v1324
    %v1326 = vsel %vm191, %v1314, 0.0
    %v1327 = vadd.f32 %v1325, %v1326
    %v1328 = vsel %vm191, %v1315, 0.0
    %v1329 = vadd.f32 %v1327, %v1328
    %v1330 = vsel %vm191, %v1316, 0.0
    %v1331 = vadd.f32 %v1329, %v1330
    %v1332 = vrot.slane %v1331, 4
    %v1333 = vadd.f32 %v1331, %v1332
    %v1334 = vrot.slane %v1333, 2
    %v1335 = vadd.f32 %v1333, %v1334
    %v1336 = vrot.slane %v1335, 1
    %v1337 = vadd.f32 %v1335, %v1336
    %v1338 = vmul.f32 %v1337, %v423
    %1340 = vrot.lane.b32.xlu0 %v1338, 96
    %v1341 = vpop.permute.xlu0 %1340
    %vm1343 = vcmask 1041152
    %1344 = vst.msk [vmem:[#allocation3] sm:$0x1] %vm1343, %v1341
    // Predicated region
    $region90: #{gcn_forward.1} parent=1 // pred_check
      _
    $region91: #{gcn_forward.1} parent=1 // pred_check_branch
      %1346 = sbr.rel (0) target = $region93
    $region92: #{gcn_forward.1} parent=1 // pred_region
      %s1348 = ssub.s32 16, 16
      %1349 = vsyncadd [#allocation4], %s1348
      %s1351 = sshll.u32 [#allocation3], 4
      %s1352 = int_to_ptr.vmem [resolvable:$true] %s1351
      %1354 = dma.vmem_to_hbm [thread:$0]  %s1352, 16, %s22, [#allocation4]
    $region93: #{gcn_forward.1} parent=1 // pred_fallthru
      _
    // Predicated region
    $region94: #{gcn_forward.1} parent=1 // pred_check
      _
    $region95: #{gcn_forward.1} parent=1 // pred_check_branch
      %1356 = sbr.rel (0) target = $region97
    $region96: #{gcn_forward.1} parent=1 // pred_region
      %1357 = dma.done [#allocation4], 16
    $region97: #{gcn_forward.1} parent=1 // pred_fallthru
      _
    %1358 = vsyncpa [#allocation4], 1

</llo_original>
